<compile_context>
chip_gen: v6e
topology: v6e:2x2x1
jax: 0.10.0
libtpu: 0.0.40
codegen_flags: <defaults>
</compile_context>

<pallas_src>
import jax
import jax.numpy as jnp
from jax.experimental import pallas as pl
from jax.experimental.pallas import tpu as pltpu


def _round_up(x, m):
    return ((x + m - 1) // m) * m


def _vmem_budget_bytes():
    """Generation-aware VMEM limit: ~75% of per-core VMEM, capped at 100 MiB.
    v7x (64 MiB/TC) -> 48 MiB; v5e/v6e (128 MiB) -> 96-100 MiB."""
    vmem = 0
    try:  # hardware probe only; on any failure fall back to a v7x-safe budget.
        info = pltpu.get_tpu_info()
        vmem = int(getattr(info, "vmem_capacity_bytes", 0) or 0)
    except Exception:
        vmem = 0
    if vmem <= 0:
        return 48 * 1024 * 1024
    return min((vmem * 3) // 4, 100 * 1024 * 1024)


def _pick_lane_tile(hw, tl_cap, n_batch):
    """Pick the spatial (lane) tile.

    Returns (tile, padded_hw). When hw % 128 == 0 the tile is a divisor of hw
    (no padding, no output slice); it is the largest multiple-of-128 divisor
    <= tl_cap that still yields >= 4 grid steps (megacore / pipeline slack),
    falling back to the smallest valid divisor for tiny workloads.
    """
    if hw % 128 == 0:
        q = hw // 128
        ks = [k for k in range(1, q + 1) if q % k == 0 and 128 * k <= tl_cap]
        if not ks:
            ks = [1]
        for k in sorted(ks, reverse=True):
            if n_batch * (q // k) >= 4:
                return 128 * k, hw
        return 128 * min(ks), hw
    # Ragged spatial size (rare): pad up to a multiple of the tile.
    tile = min(_round_up(hw, 128), _round_up(max(tl_cap, 128), 128))
    return tile, _round_up(hw, tile)


def _res_concate_kernel(
    x_cat_ref,     # (1, C,  TL)  activation tile (source dtype)
    x_img_ref,     # (1, Ci, TL)
    x_inf_ref,     # (1, Cf, TL)
    w1a_ref,       # (2C, C)   cat_conv conv#1 weight cols for x_cat (BN folded)
    w1i_ref,       # (2C, Ci)  ... cols for x_img
    w1n_ref,       # (2C, Cf)  ... cols for x_inf
    b1_ref,        # (2C, 1)   folded BN bias (f32)
    w2_ref,        # (C, 2C)   cat_conv conv#2 weight (BN folded)
    b2_ref,        # (C, 1)
    w3_ref,        # (C, C)    conv weight (BN folded) -- applied twice
    w3i_ref,       # (C, Ci)   w3 cols for x_img  (img_inf residual folded through conv)
    w3n_ref,       # (C, Cf)   w3 cols for x_inf
    b3_ref,        # (C, 1)
    o_ref,         # (1, C, TL)
):
    cdt = w2_ref.dtype          # MXU operand dtype (bf16 or f32)

    xc = x_cat_ref[0]           # (C,  TL) source dtype
    xi = x_img_ref[0]           # (Ci, TL)
    xn = x_inf_ref[0]           # (Cf, TL)
    xc_c = xc.astype(cdt)
    xi_c = xi.astype(cdt)
    xn_c = xn.astype(cdt)

    # cat_conv[0]: conv1x1(2C->2C) + BN + ReLU over concat([x_cat, x_img, x_inf]).
    # Split-weight form: no channel concat in HBM or VMEM; f32 accumulation.
    h1 = (jnp.dot(w1a_ref[...], xc_c, preferred_element_type=jnp.float32)
          + jnp.dot(w1i_ref[...], xi_c, preferred_element_type=jnp.float32)
          + jnp.dot(w1n_ref[...], xn_c, preferred_element_type=jnp.float32))
    h1 = jnp.maximum(h1 + b1_ref[...], 0.0)                        # (2C, TL) f32

    # cat_conv[1]: conv1x1(2C->C) + BN + ReLU
    h2 = jnp.dot(w2_ref[...], h1.astype(cdt), preferred_element_type=jnp.float32)
    h2 = jnp.maximum(h2 + b2_ref[...], 0.0)                        # (C, TL) f32

    # residual add with x_cat (f32 VPU add)
    h2 = h2 + xc.astype(jnp.float32)

    # conv: conv1x1(C->C) + BN + ReLU
    h3 = jnp.dot(w3_ref[...], h2.astype(cdt), preferred_element_type=jnp.float32)
    h3 = jnp.maximum(h3 + b3_ref[...], 0.0)

    # conv applied again on (h3 + img_inf); W3 @ img_inf is expanded into split
    # dots so concat([x_img, x_inf]) never has to be materialized.
    h4 = (jnp.dot(w3_ref[...], h3.astype(cdt), preferred_element_type=jnp.float32)
          + jnp.dot(w3i_ref[...], xi_c, preferred_element_type=jnp.float32)
          + jnp.dot(w3n_ref[...], xn_c, preferred_element_type=jnp.float32))
    h4 = jnp.maximum(h4 + b3_ref[...], 0.0)

    o_ref[0] = h4.astype(o_ref.dtype)


def _fold_params(params, img_ch, compute_dtype, eps=1e-5):
    """Fold eval-mode BN into conv weights (scale) + per-channel f32 bias and
    split weights along the concatenated input channels."""
    w1, bn1, w2, bn2, w3, bn3 = params

    def fold(w, bn):
        gamma, beta, mean, var = (a.astype(jnp.float32) for a in bn)
        scale = gamma / jnp.sqrt(var + eps)
        w_f = (w.astype(jnp.float32) * scale[:, None]).astype(compute_dtype)
        b_f = ((beta - mean * scale)[:, None]).astype(jnp.float32)   # bias stays f32
        return w_f, b_f

    w1f, b1 = fold(w1, bn1)
    w2f, b2 = fold(w2, bn2)
    w3f, b3 = fold(w3, bn3)
    C = w3.shape[0]
    Ci = img_ch
    w1a = w1f[:, :C]            # columns for x_cat
    w1i = w1f[:, C:C + Ci]      # columns for x_img
    w1n = w1f[:, C + Ci:]       # columns for x_inf
    w3i = w3f[:, :Ci]           # w3 columns hitting the x_img part of img_inf
    w3n = w3f[:, Ci:]           # w3 columns hitting the x_inf part of img_inf
    return (w1a, w1i, w1n, b1, w2f, b2, w3f, w3i, w3n, b3)


def res_concate_pallas(x_cat, x_img, x_inf, params, *, tl=None,
                       compute_dtype=jnp.bfloat16, out_dtype=None,
                       single_buffer_weights=True):
    """x_cat: (N, C, H, W); x_img: (N, Ci, H, W); x_inf: (N, Cf, H, W); Ci+Cf == C."""
    N, C, H, W = x_cat.shape
    Ci, Cf = x_img.shape[1], x_inf.shape[1]
    assert Ci + Cf == C, "ResConcate requires img_ch + inf_ch == cat_ch"
    assert x_img.shape[0] == N and x_img.shape[2:] == (H, W)
    assert x_inf.shape[0] == N and x_inf.shape[2:] == (H, W)
    HW = H * W
    C2 = 2 * C
    out_dtype = jnp.dtype(out_dtype) if out_dtype is not None else jnp.dtype(x_cat.dtype)
    cdt = jnp.dtype(compute_dtype) if compute_dtype is not None else jnp.dtype(x_cat.dtype)

    # Lane tile: large for small C, smaller for big C (keeps the f32 intermediates
    # h1..h4 from spilling onto the store slot); divisor of HW when HW % 128 == 0.
    if tl is None:
        tl = 512 if C <= 128 else 256
    tile, HW_pad = _pick_lane_tile(HW, int(tl), N)

    # Pure reshapes only (no concat, no dtype cast, no transpose) at the boundary.
    x_cat_r = x_cat.reshape(N, C, HW)
    x_img_r = x_img.reshape(N, Ci, HW)
    x_inf_r = x_inf.reshape(N, Cf, HW)
    if HW_pad != HW:   # rare ragged-spatial fallback
        pad = ((0, 0), (0, 0), (0, HW_pad - HW))
        x_cat_r = jnp.pad(x_cat_r, pad)
        x_img_r = jnp.pad(x_img_r, pad)
        x_inf_r = jnp.pad(x_inf_r, pad)

    weights = _fold_params(params, Ci, cdt)
    grid = (N, HW_pad // tile)

    act_bytes = jnp.dtype(x_cat.dtype).itemsize
    cost = pl.CostEstimate(
        # MACs per pixel: 4C^2 (conv1) + 2C^2 (conv2) + C^2 (conv3) + 2C^2 (conv4 expanded)
        flops=18 * N * HW_pad * C * C,
        transcendentals=0,
        bytes_accessed=(2 * N * C * HW_pad * act_bytes                 # x_cat + x_img + x_inf
                        + N * C * HW_pad * out_dtype.itemsize          # output
                        + sum(int(a.size) * a.dtype.itemsize for a in weights)),
    )

    def build(use_single_buffer_weights):
        wkw = {"pipeline_mode": pl.Buffered(1)} if use_single_buffer_weights else {}

        def act_spec(ch):
            return pl.BlockSpec((1, ch, tile), lambda n, j: (n, 0, j))

        def w_spec(shape):
            # Constant index_map -> DMA'd once; Buffered(1) drops the second
            # (unused) VMEM buffer for the weights.
            return pl.BlockSpec(shape, lambda n, j: (0, 0), **wkw)

        return pl.pallas_call(
            _res_concate_kernel,
            out_shape=jax.ShapeDtypeStruct((N, C, HW_pad), out_dtype),
            grid=grid,
            in_specs=[
                act_spec(C), act_spec(Ci), act_spec(Cf),
                w_spec((C2, C)), w_spec((C2, Ci)), w_spec((C2, Cf)), w_spec((C2, 1)),
                w_spec((C, C2)), w_spec((C, 1)),
                w_spec((C, C)), w_spec((C, Ci)), w_spec((C, Cf)), w_spec((C, 1)),
            ],
            out_specs=pl.BlockSpec((1, C, tile), lambda n, j: (n, 0, j)),
            compiler_params=pltpu.CompilerParams(
                dimension_semantics=("parallel", "parallel"),
                vmem_limit_bytes=_vmem_budget_bytes(),
            ),
            cost_estimate=cost,
        )

    args = (x_cat_r, x_img_r, x_inf_r) + weights
    if single_buffer_weights:
        try:
            out = build(True)(*args)
        except (pltpu.LoweringException, NotImplementedError):
            # Only "single-buffered blocks unsupported" style failures fall back;
            # genuine compile / VMEM errors propagate with their diagnostics.
            out = build(False)(*args)
    else:
        out = build(False)(*args)

    if HW_pad != HW:
        out = out[..., :HW]
    return out.reshape(N, C, H, W)


def make_params(key, cat_ch):
    """PyTorch-layout params: conv weights (C_out, C_in); BN as (gamma, beta, mean, var)."""
    C = cat_ch
    C2 = 2 * C
    keys = jax.random.split(key, 15)

    def bn(k0, k1, k2, k3, ch):
        gamma = jax.random.normal(k0, (ch,), jnp.float32) * 0.1 + 1.0
        beta = jax.random.normal(k1, (ch,), jnp.float32) * 0.1
        mean = jax.random.normal(k2, (ch,), jnp.float32) * 0.1
        var = jax.random.uniform(k3, (ch,), jnp.float32, minval=0.5, maxval=1.5)
        return (gamma, beta, mean, var)

    w1 = jax.random.normal(keys[0], (C2, C2), jnp.float32) * 0.1
    bn1 = bn(keys[1], keys[2], keys[3], keys[4], C2)
    w2 = jax.random.normal(keys[5], (C, C2), jnp.float32) * 0.1
    bn2 = bn(keys[6], keys[7], keys[8], keys[9], C)
    w3 = jax.random.normal(keys[10], (C, C), jnp.float32) * 0.1
    bn3 = bn(keys[11], keys[12], keys[13], keys[14], C)
    return (w1, bn1, w2, bn2, w3, bn3)


def res_concate_reference(x_cat, x_img, x_inf, params, eps=1e-5):
    """Pure-JAX reference (NCHW), mirrors the PyTorch forward in eval mode."""
    w1, bn1, w2, bn2, w3, bn3 = params

    def conv_bn_relu(x, w, bn_p):
        gamma, beta, mean, var = bn_p
        y = jnp.einsum("oc,nchw->nohw", w.astype(jnp.float32), x.astype(jnp.float32))
        scale = gamma / jnp.sqrt(var + eps)
        y = y * scale[None, :, None, None] + (beta - mean * scale)[None, :, None, None]
        return jnp.maximum(y, 0.0)

    img_inf = jnp.concatenate([x_img, x_inf], axis=1)
    concat = jnp.concatenate([x_cat, img_inf], axis=1)
    concat = conv_bn_relu(concat, w1, bn1)
    concat = conv_bn_relu(concat, w2, bn2)
    concat = concat + x_cat
    concat = conv_bn_relu(concat, w3, bn3)
    concat = concat + img_inf
    concat = conv_bn_relu(concat, w3, bn3)
    return concat.astype(x_cat.dtype)


if __name__ == "__main__":
    key = jax.random.PRNGKey(0)
    cat_ch, img_ch, inf_ch = 4, 2, 2      # requires img_ch + inf_ch == cat_ch
    N, H, W = 2, 16, 16

    k1, k2, k3, kp = jax.random.split(key, 4)
    x_cat = jax.random.normal(k1, (N, cat_ch, H, W), jnp.float32)
    x_img = jax.random.normal(k2, (N, img_ch, H, W), jnp.float32)
    x_inf = jax.random.normal(k3, (N, inf_ch, H, W), jnp.float32)
    params = make_params(kp, cat_ch)

    ref = res_concate_reference(x_cat, x_img, x_inf, params)

    # Full-precision MXU-operand path: tight check vs the PyTorch-style reference.
    out_f32 = jax.block_until_ready(
        res_concate_pallas(x_cat, x_img, x_inf, params, compute_dtype=jnp.float32))
    assert out_f32.shape == (N, cat_ch, H, W)
    assert jnp.allclose(out_f32, ref, atol=1e-4, rtol=1e-4), "f32 mismatch vs reference"

    # Default path: bf16 MXU operands, f32 accumulation / residuals / elementwise.
    out_bf16 = jax.block_until_ready(res_concate_pallas(x_cat, x_img, x_inf, params))
    assert out_bf16.shape == (N, cat_ch, H, W)
    assert jnp.allclose(out_bf16, ref, atol=5e-2, rtol=5e-2), "bf16 mismatch vs reference"

    print("KERNEL_OK")
</pallas_src>

<mosaic_0001>
module attributes {stable_mosaic.version = 11 : i64} {
  func.func @_res_concate_kernel(%arg0: i32, %arg1: i32, %arg2: memref<1x4x128xf32, #tpu.memory_space<vmem>>, %arg3: memref<1x2x128xf32, #tpu.memory_space<vmem>>, %arg4: memref<1x2x128xf32, #tpu.memory_space<vmem>>, %arg5: memref<8x4xf32, #tpu.memory_space<vmem>>, %arg6: memref<8x2xf32, #tpu.memory_space<vmem>>, %arg7: memref<8x2xf32, #tpu.memory_space<vmem>>, %arg8: memref<8x1xf32, #tpu.memory_space<vmem>>, %arg9: memref<4x8xf32, #tpu.memory_space<vmem>>, %arg10: memref<4x1xf32, #tpu.memory_space<vmem>>, %arg11: memref<4x4xf32, #tpu.memory_space<vmem>>, %arg12: memref<4x2xf32, #tpu.memory_space<vmem>>, %arg13: memref<4x2xf32, #tpu.memory_space<vmem>>, %arg14: memref<4x1xf32, #tpu.memory_space<vmem>>, %arg15: memref<1x4x128xf32, #tpu.memory_space<vmem>>) attributes {dimension_semantics = [#tpu.dimension_semantics<parallel>, #tpu.dimension_semantics<parallel>], iteration_bounds = array<i64: 2, 2>, scalar_prefetch = 0 : i64, scratch_operands = 0 : i64, tpu.core_type = #tpu.core_type<tc>, window_params = [{transform_indices = @transform_0, window_bounds = array<i64: 1, 4, 128>}, {transform_indices = @transform_1, window_bounds = array<i64: 1, 2, 128>}, {transform_indices = @transform_2, window_bounds = array<i64: 1, 2, 128>}, {pipeline_mode = #tpu.pipeline_mode<synchronous>, transform_indices = @transform_3, window_bounds = array<i64: 8, 4>}, {pipeline_mode = #tpu.pipeline_mode<synchronous>, transform_indices = @transform_4, window_bounds = array<i64: 8, 2>}, {pipeline_mode = #tpu.pipeline_mode<synchronous>, transform_indices = @transform_5, window_bounds = array<i64: 8, 2>}, {pipeline_mode = #tpu.pipeline_mode<synchronous>, transform_indices = @transform_6, window_bounds = array<i64: 8, 1>}, {pipeline_mode = #tpu.pipeline_mode<synchronous>, transform_indices = @transform_7, window_bounds = array<i64: 4, 8>}, {pipeline_mode = #tpu.pipeline_mode<synchronous>, transform_indices = @transform_8, window_bounds = array<i64: 4, 1>}, {pipeline_mode = #tpu.pipeline_mode<synchronous>, transform_indices = @transform_9, window_bounds = array<i64: 4, 4>}, {pipeline_mode = #tpu.pipeline_mode<synchronous>, transform_indices = @transform_10, window_bounds = array<i64: 4, 2>}, {pipeline_mode = #tpu.pipeline_mode<synchronous>, transform_indices = @transform_11, window_bounds = array<i64: 4, 2>}, {pipeline_mode = #tpu.pipeline_mode<synchronous>, transform_indices = @transform_12, window_bounds = array<i64: 4, 1>}, {transform_indices = @transform_13, window_bounds = array<i64: 1, 4, 128>}]} {
    %c0 = arith.constant 0 : index
    %c0_0 = arith.constant 0 : index
    %c0_1 = arith.constant 0 : index
    %0 = vector.load %arg2[%c0, %c0_0, %c0_1] : memref<1x4x128xf32, #tpu.memory_space<vmem>>, vector<1x4x128xf32>
    %1 = vector.shape_cast %0 : vector<1x4x128xf32> to vector<4x128xf32>
    %c0_2 = arith.constant 0 : index
    %c0_3 = arith.constant 0 : index
    %c0_4 = arith.constant 0 : index
    %2 = vector.load %arg3[%c0_2, %c0_3, %c0_4] : memref<1x2x128xf32, #tpu.memory_space<vmem>>, vector<1x2x128xf32>
    %3 = vector.shape_cast %2 : vector<1x2x128xf32> to vector<2x128xf32>
    %c0_5 = arith.constant 0 : index
    %c0_6 = arith.constant 0 : index
    %c0_7 = arith.constant 0 : index
    %4 = vector.load %arg4[%c0_5, %c0_6, %c0_7] : memref<1x2x128xf32, #tpu.memory_space<vmem>>, vector<1x2x128xf32>
    %5 = vector.shape_cast %4 : vector<1x2x128xf32> to vector<2x128xf32>
    %c0_8 = arith.constant 0 : index
    %c0_9 = arith.constant 0 : index
    %6 = vector.load %arg5[%c0_8, %c0_9] : memref<8x4xf32, #tpu.memory_space<vmem>>, vector<8x4xf32>
    %cst = arith.constant dense<0.000000e+00> : vector<8x128xf32>
    %7 = tpu.matmul %6, %1, %cst {dimension_numbers = #tpu.dot_dimension_numbers<[1], [0], [0], [1], [0, 0, 1, 1], [], []>} : vector<8x4xf32>, vector<4x128xf32>, vector<8x128xf32> -> vector<8x128xf32>
    %c0_10 = arith.constant 0 : index
    %c0_11 = arith.constant 0 : index
    %8 = vector.load %arg6[%c0_10, %c0_11] : memref<8x2xf32, #tpu.memory_space<vmem>>, vector<8x2xf32>
    %cst_12 = arith.constant dense<0.000000e+00> : vector<8x128xf32>
    %9 = tpu.matmul %8, %3, %cst_12 {dimension_numbers = #tpu.dot_dimension_numbers<[1], [0], [0], [1], [0, 0, 1, 1], [], []>} : vector<8x2xf32>, vector<2x128xf32>, vector<8x128xf32> -> vector<8x128xf32>
    %10 = arith.addf %7, %9 : vector<8x128xf32>
    %c0_13 = arith.constant 0 : index
    %c0_14 = arith.constant 0 : index
    %11 = vector.load %arg7[%c0_13, %c0_14] : memref<8x2xf32, #tpu.memory_space<vmem>>, vector<8x2xf32>
    %cst_15 = arith.constant dense<0.000000e+00> : vector<8x128xf32>
    %12 = tpu.matmul %11, %5, %cst_15 {dimension_numbers = #tpu.dot_dimension_numbers<[1], [0], [0], [1], [0, 0, 1, 1], [], []>} : vector<8x2xf32>, vector<2x128xf32>, vector<8x128xf32> -> vector<8x128xf32>
    %13 = arith.addf %10, %12 : vector<8x128xf32>
    %c0_16 = arith.constant 0 : index
    %c0_17 = arith.constant 0 : index
    %14 = vector.load %arg8[%c0_16, %c0_17] : memref<8x1xf32, #tpu.memory_space<vmem>>, vector<8x1xf32>
    %15 = vector.broadcast %14 : vector<8x1xf32> to vector<8x128xf32>
    %16 = arith.addf %13, %15 : vector<8x128xf32>
    %cst_18 = arith.constant 0.000000e+00 : f32
    %17 = vector.broadcast %cst_18 : f32 to vector<8x128xf32>
    %18 = arith.maximumf %16, %17 : vector<8x128xf32>
    %c0_19 = arith.constant 0 : index
    %c0_20 = arith.constant 0 : index
    %19 = vector.load %arg9[%c0_19, %c0_20] : memref<4x8xf32, #tpu.memory_space<vmem>>, vector<4x8xf32>
    %cst_21 = arith.constant dense<0.000000e+00> : vector<4x128xf32>
    %20 = tpu.matmul %19, %18, %cst_21 {dimension_numbers = #tpu.dot_dimension_numbers<[1], [0], [0], [1], [0, 0, 1, 1], [], []>} : vector<4x8xf32>, vector<8x128xf32>, vector<4x128xf32> -> vector<4x128xf32>
    %c0_22 = arith.constant 0 : index
    %c0_23 = arith.constant 0 : index
    %21 = vector.load %arg10[%c0_22, %c0_23] : memref<4x1xf32, #tpu.memory_space<vmem>>, vector<4x1xf32>
    %22 = vector.broadcast %21 : vector<4x1xf32> to vector<4x128xf32>
    %23 = arith.addf %20, %22 : vector<4x128xf32>
    %cst_24 = arith.constant 0.000000e+00 : f32
    %24 = vector.broadcast %cst_24 : f32 to vector<4x128xf32>
    %25 = arith.maximumf %23, %24 : vector<4x128xf32>
    %26 = arith.addf %25, %1 : vector<4x128xf32>
    %c0_25 = arith.constant 0 : index
    %c0_26 = arith.constant 0 : index
    %27 = vector.load %arg11[%c0_25, %c0_26] : memref<4x4xf32, #tpu.memory_space<vmem>>, vector<4x4xf32>
    %cst_27 = arith.constant dense<0.000000e+00> : vector<4x128xf32>
    %28 = tpu.matmul %27, %26, %cst_27 {dimension_numbers = #tpu.dot_dimension_numbers<[1], [0], [0], [1], [0, 0, 1, 1], [], []>} : vector<4x4xf32>, vector<4x128xf32>, vector<4x128xf32> -> vector<4x128xf32>
    %c0_28 = arith.constant 0 : index
    %c0_29 = arith.constant 0 : index
    %29 = vector.load %arg14[%c0_28, %c0_29] : memref<4x1xf32, #tpu.memory_space<vmem>>, vector<4x1xf32>
    %30 = vector.broadcast %29 : vector<4x1xf32> to vector<4x128xf32>
    %31 = arith.addf %28, %30 : vector<4x128xf32>
    %cst_30 = arith.constant 0.000000e+00 : f32
    %32 = vector.broadcast %cst_30 : f32 to vector<4x128xf32>
    %33 = arith.maximumf %31, %32 : vector<4x128xf32>
    %c0_31 = arith.constant 0 : index
    %c0_32 = arith.constant 0 : index
    %34 = vector.load %arg11[%c0_31, %c0_32] : memref<4x4xf32, #tpu.memory_space<vmem>>, vector<4x4xf32>
    %cst_33 = arith.constant dense<0.000000e+00> : vector<4x128xf32>
    %35 = tpu.matmul %34, %33, %cst_33 {dimension_numbers = #tpu.dot_dimension_numbers<[1], [0], [0], [1], [0, 0, 1, 1], [], []>} : vector<4x4xf32>, vector<4x128xf32>, vector<4x128xf32> -> vector<4x128xf32>
    %c0_34 = arith.constant 0 : index
    %c0_35 = arith.constant 0 : index
    %36 = vector.load %arg12[%c0_34, %c0_35] : memref<4x2xf32, #tpu.memory_space<vmem>>, vector<4x2xf32>
    %cst_36 = arith.constant dense<0.000000e+00> : vector<4x128xf32>
    %37 = tpu.matmul %36, %3, %cst_36 {dimension_numbers = #tpu.dot_dimension_numbers<[1], [0], [0], [1], [0, 0, 1, 1], [], []>} : vector<4x2xf32>, vector<2x128xf32>, vector<4x128xf32> -> vector<4x128xf32>
    %38 = arith.addf %35, %37 : vector<4x128xf32>
    %c0_37 = arith.constant 0 : index
    %c0_38 = arith.constant 0 : index
    %39 = vector.load %arg13[%c0_37, %c0_38] : memref<4x2xf32, #tpu.memory_space<vmem>>, vector<4x2xf32>
    %cst_39 = arith.constant dense<0.000000e+00> : vector<4x128xf32>
    %40 = tpu.matmul %39, %5, %cst_39 {dimension_numbers = #tpu.dot_dimension_numbers<[1], [0], [0], [1], [0, 0, 1, 1], [], []>} : vector<4x2xf32>, vector<2x128xf32>, vector<4x128xf32> -> vector<4x128xf32>
    %41 = arith.addf %38, %40 : vector<4x128xf32>
    %c0_40 = arith.constant 0 : index
    %c0_41 = arith.constant 0 : index
    %42 = vector.load %arg14[%c0_40, %c0_41] : memref<4x1xf32, #tpu.memory_space<vmem>>, vector<4x1xf32>
    %43 = vector.broadcast %42 : vector<4x1xf32> to vector<4x128xf32>
    %44 = arith.addf %41, %43 : vector<4x128xf32>
    %cst_42 = arith.constant 0.000000e+00 : f32
    %45 = vector.broadcast %cst_42 : f32 to vector<4x128xf32>
    %46 = arith.maximumf %44, %45 : vector<4x128xf32>
    %c0_43 = arith.constant 0 : index
    %c0_44 = arith.constant 0 : index
    %c0_45 = arith.constant 0 : index
    %47 = vector.load %arg15[%c0_43, %c0_44, %c0_45] : memref<1x4x128xf32, #tpu.memory_space<vmem>>, vector<1x4x128xf32>
    %48 = vector.shape_cast %47 : vector<1x4x128xf32> to vector<4x128xf32>
    %49 = vector.shape_cast %46 : vector<4x128xf32> to vector<1x4x128xf32>
    tpu.vector_store %arg15[%c0_43, %c0_44, %c0_45], %49 {strides = array<i32>} : memref<1x4x128xf32, #tpu.memory_space<vmem>>, vector<1x4x128xf32>,
    return
  }
  func.func @transform_0(%arg0: i32, %arg1: i32) -> (i32, i32, i32) {
    %c0_i32 = arith.constant 0 : i32
    %c0_i32_0 = arith.constant 0 : i32
    return %arg0, %c0_i32, %arg1 : i32, i32, i32
  }
  func.func @transform_1(%arg0: i32, %arg1: i32) -> (i32, i32, i32) {
    %c0_i32 = arith.constant 0 : i32
    %c0_i32_0 = arith.constant 0 : i32
    return %arg0, %c0_i32, %arg1 : i32, i32, i32
  }
  func.func @transform_2(%arg0: i32, %arg1: i32) -> (i32, i32, i32) {
    %c0_i32 = arith.constant 0 : i32
    %c0_i32_0 = arith.constant 0 : i32
    return %arg0, %c0_i32, %arg1 : i32, i32, i32
  }
  func.func @transform_3(%arg0: i32, %arg1: i32) -> (i32, i32) {
    %c0_i32 = arith.constant 0 : i32
    %c0_i32_0 = arith.constant 0 : i32
    %c0_i32_1 = arith.constant 0 : i32
    return %c0_i32, %c0_i32_0 : i32, i32
  }
  func.func @transform_4(%arg0: i32, %arg1: i32) -> (i32, i32) {
    %c0_i32 = arith.constant 0 : i32
    %c0_i32_0 = arith.constant 0 : i32
    %c0_i32_1 = arith.constant 0 : i32
    return %c0_i32, %c0_i32_0 : i32, i32
  }
  func.func @transform_5(%arg0: i32, %arg1: i32) -> (i32, i32) {
    %c0_i32 = arith.constant 0 : i32
    %c0_i32_0 = arith.constant 0 : i32
    %c0_i32_1 = arith.constant 0 : i32
    return %c0_i32, %c0_i32_0 : i32, i32
  }
  func.func @transform_6(%arg0: i32, %arg1: i32) -> (i32, i32) {
    %c0_i32 = arith.constant 0 : i32
    %c0_i32_0 = arith.constant 0 : i32
    %c0_i32_1 = arith.constant 0 : i32
    return %c0_i32, %c0_i32_0 : i32, i32
  }
  func.func @transform_7(%arg0: i32, %arg1: i32) -> (i32, i32) {
    %c0_i32 = arith.constant 0 : i32
    %c0_i32_0 = arith.constant 0 : i32
    %c0_i32_1 = arith.constant 0 : i32
    return %c0_i32, %c0_i32_0 : i32, i32
  }
  func.func @transform_8(%arg0: i32, %arg1: i32) -> (i32, i32) {
    %c0_i32 = arith.constant 0 : i32
    %c0_i32_0 = arith.constant 0 : i32
    %c0_i32_1 = arith.constant 0 : i32
    return %c0_i32, %c0_i32_0 : i32, i32
  }
  func.func @transform_9(%arg0: i32, %arg1: i32) -> (i32, i32) {
    %c0_i32 = arith.constant 0 : i32
    %c0_i32_0 = arith.constant 0 : i32
    %c0_i32_1 = arith.constant 0 : i32
    return %c0_i32, %c0_i32_0 : i32, i32
  }
  func.func @transform_10(%arg0: i32, %arg1: i32) -> (i32, i32) {
    %c0_i32 = arith.constant 0 : i32
    %c0_i32_0 = arith.constant 0 : i32
    %c0_i32_1 = arith.constant 0 : i32
    return %c0_i32, %c0_i32_0 : i32, i32
  }
  func.func @transform_11(%arg0: i32, %arg1: i32) -> (i32, i32) {
    %c0_i32 = arith.constant 0 : i32
    %c0_i32_0 = arith.constant 0 : i32
    %c0_i32_1 = arith.constant 0 : i32
    return %c0_i32, %c0_i32_0 : i32, i32
  }
  func.func @transform_12(%arg0: i32, %arg1: i32) -> (i32, i32) {
    %c0_i32 = arith.constant 0 : i32
    %c0_i32_0 = arith.constant 0 : i32
    %c0_i32_1 = arith.constant 0 : i32
    return %c0_i32, %c0_i32_0 : i32, i32
  }
  func.func @transform_13(%arg0: i32, %arg1: i32) -> (i32, i32, i32) {
    %c0_i32 = arith.constant 0 : i32
    %c0_i32_0 = arith.constant 0 : i32
    return %arg0, %c0_i32, %arg1 : i32, i32, i32
  }
}

</mosaic_0001>

<llo_original>
// kernel: tpu_custom_call.1
$region0: #{tpu_custom_call.1}
  #allocation0 [shape = 'u32[]', space=smem, size = 0x4, offset = 0x4, fixed_abs, tag = 'smem constant byte address 0x4 - core index']
  #allocation1 [shape = 'u32[144,128]{1,0:T(1,128)}', space=vmem, size = 0x12000, scoped, tag = 'internal scratch']
  %s0 = inlined_call_operand.vmem [shape: f32[2,4,256], index: 0, kind: input, shape index: {}]
  %s1 = inlined_call_operand.vmem [shape: f32[2,2,256], index: 1, kind: input, shape index: {}]
  %s2 = inlined_call_operand.vmem [shape: f32[2,2,256], index: 2, kind: input, shape index: {}]
  %s3 = inlined_call_operand.vmem [shape: f32[8,4], index: 3, kind: input, shape index: {}]
  %s4 = inlined_call_operand.vmem [shape: f32[8,2], index: 4, kind: input, shape index: {}]
  %s5 = inlined_call_operand.vmem [shape: f32[8,2], index: 5, kind: input, shape index: {}]
  %s6 = inlined_call_operand.vmem [shape: f32[8,1], index: 6, kind: input, shape index: {}]
  %s7 = inlined_call_operand.vmem [shape: f32[4,8], index: 7, kind: input, shape index: {}]
  %s8 = inlined_call_operand.vmem [shape: f32[4,1], index: 8, kind: input, shape index: {}]
  %s9 = inlined_call_operand.vmem [shape: f32[4,4], index: 9, kind: input, shape index: {}]
  %s10 = inlined_call_operand.vmem [shape: f32[4,2], index: 10, kind: input, shape index: {}]
  %s11 = inlined_call_operand.vmem [shape: f32[4,2], index: 11, kind: input, shape index: {}]
  %s12 = inlined_call_operand.vmem [shape: f32[4,1], index: 12, kind: input, shape index: {}]
  %s13 = inlined_call_operand.hbm [shape: f32[2,4,256], index: 13, kind: output, shape index: {}]
  %s14 = sld [smem:[#allocation0]]
  $region85: #{tpu_custom_call.1} parent=0
    _
  %s16 = ssub.s32 1, %s14
  %s17 = scalar_select 0, %s16, %s14
  $region1: #{tpu_custom_call.1} parent=0
    #allocation2 [shape = 'u8[4096]{0}', space=vmem, size = 0x1000, scoped, tag = 'output window, operand 0']
    #allocation3 [shape = 's32[2]{0}', space=sflag, size = 0x8, scoped, tag = 'scoped memory for tpu_custom_call.1']
    %18 = vsyncpa [#allocation3], 0
    %s19 = scalar_lea.sflag [#allocation3], 1
    %20 = vsyncpa %s19, 0
    loop: start=0, step=1, limit=6
    $region2: #{tpu_custom_call.1} parent=1 // loop_pre_header
      _
    $region3: #{tpu_custom_call.1} parent=1 // loop_header
      %s22 = sphi 0, %s26
      %p23 = scmp.ge.s32.totalorder %s22, 6
      %s29 = sphi 0, %s41
      %s30 = sphi 0, %s37
      %s31 = sphi 0, %s29
      %s32 = sphi 0, %s30
      %s33 = sphi 0, %s31
      %s34 = sphi 0, %s32
      %s46 = sphi 0, %s48
      %s49 = sphi 0, %s46
      %s50 = sphi 0, %s49
      %s66 = sphi 0, %s50
      %s74 = sphi 0, %s76
      %s77 = sphi 0, %s74
      %s78 = sphi 0, %s77
      %s94 = sphi 0, %s78
      %s102 = sphi 0, %s104
      %s105 = sphi 0, %s102
      %s106 = sphi 0, %s105
      %s122 = sphi 0, %s106
      %s126 = sphi 0, %s126
      %s128 = sphi 0, %s126
      %s129 = sphi 0, %s128
      %s143 = sphi 0, %s129
      %s147 = sphi 0, %s147
      %s149 = sphi 0, %s147
      %s150 = sphi 0, %s149
      %s164 = sphi 0, %s150
      %s168 = sphi 0, %s168
      %s170 = sphi 0, %s168
      %s171 = sphi 0, %s170
      %s185 = sphi 0, %s171
      %s189 = sphi 0, %s189
      %s191 = sphi 0, %s189
      %s192 = sphi 0, %s191
      %s206 = sphi 0, %s192
      %s210 = sphi 0, %s210
      %s212 = sphi 0, %s210
      %s213 = sphi 0, %s212
      %s227 = sphi 0, %s213
      %s231 = sphi 0, %s231
      %s233 = sphi 0, %s231
      %s234 = sphi 0, %s233
      %s248 = sphi 0, %s234
      %s252 = sphi 0, %s252
      %s254 = sphi 0, %s252
      %s255 = sphi 0, %s254
      %s269 = sphi 0, %s255
      %s273 = sphi 0, %s273
      %s275 = sphi 0, %s273
      %s276 = sphi 0, %s275
      %s290 = sphi 0, %s276
      %s294 = sphi 0, %s294
      %s296 = sphi 0, %s294
      %s297 = sphi 0, %s296
      %s311 = sphi 0, %s297
      %s315 = sphi 0, %s315
      %s317 = sphi 0, %s315
      %s318 = sphi 0, %s317
      %s332 = sphi 0, %s318
      %s340 = sphi 0, %s342
      %s343 = sphi 0, %s340
      %s344 = sphi 0, %s343
      %s360 = sphi 0, %s344
    $region4: #{tpu_custom_call.1} parent=1 // loop_header_branch
      %25 = sbr.rel (%p23) target = $region8
    $region5: #{tpu_custom_call.1} parent=1 // loop_body
      %s27 = ssub.s32 %s22, 1
      %s28 = ssub.s32 %s22, 2
      %s35 = sadd.s32 1, %s30
      %p36 = scmp.ge.s32.totalorder %s35, 2
      %s37 = scalar_select %p36, 0, %s35
      %s38 = sadd.s32 1, %s29
      %s39 = scalar_select %p36, %s38, %s29
      %p40 = scmp.ge.s32.totalorder %s39, 2
      %s41 = scalar_select %p40, 0, %s39
      %s42 = ssub.s32 %s29, %s41
      %s43 = ssub.s32 %s30, %s37
      %s44 = sor.u32 %s42, %s43
      %p45 = scmp.eq.s32.totalorder %s44, 0
      %s47 = sadd.s32 %s46, 1
      %s48 = scalar_select %p45, %s46, %s47
      %p51 = pneg %p45
      %p52 = scmp.eq.s32.totalorder %s22, 3
      %p53 = por %p51, %p52
      %p54 = scmp.ne.s32.totalorder %s46, %s49
      %p55 = scmp.eq.s32.totalorder %s22, 0
      %p56 = por %p54, %p55
      %p57 = scmp.ne.s32.totalorder %s46, %s49
      %p58 = scmp.eq.s32.totalorder %s27, 3
      %p59 = por %p57, %p58
      %p60 = scmp.ne.s32.totalorder %s49, %s50
      %p61 = scmp.eq.s32.totalorder %s27, 0
      %p62 = por %p60, %p61
      %p63 = scmp.ne.s32.totalorder %s49, %s50
      %p64 = scmp.eq.s32.totalorder %s28, 3
      %p65 = por %p63, %p64
      %p67 = scmp.ne.s32.totalorder %s50, %s66
      %p68 = scmp.eq.s32.totalorder %s28, 0
      %p69 = por %p67, %p68
      %s70 = ssub.s32 %s29, %s41
      %s71 = ssub.s32 %s30, %s37
      %s72 = sor.u32 %s70, %s71
      %p73 = scmp.eq.s32.totalorder %s72, 0
      %s75 = sadd.s32 %s74, 1
      %s76 = scalar_select %p73, %s74, %s75
      %p79 = pneg %p73
      %p80 = scmp.eq.s32.totalorder %s22, 3
      %p81 = por %p79, %p80
      %p82 = scmp.ne.s32.totalorder %s74, %s77
      %p83 = scmp.eq.s32.totalorder %s22, 0
      %p84 = por %p82, %p83
      %p85 = scmp.ne.s32.totalorder %s74, %s77
      %p86 = scmp.eq.s32.totalorder %s27, 3
      %p87 = por %p85, %p86
      %p88 = scmp.ne.s32.totalorder %s77, %s78
      %p89 = scmp.eq.s32.totalorder %s27, 0
      %p90 = por %p88, %p89
      %p91 = scmp.ne.s32.totalorder %s77, %s78
      %p92 = scmp.eq.s32.totalorder %s28, 3
      %p93 = por %p91, %p92
      %p95 = scmp.ne.s32.totalorder %s78, %s94
      %p96 = scmp.eq.s32.totalorder %s28, 0
      %p97 = por %p95, %p96
      %s98 = ssub.s32 %s29, %s41
      %s99 = ssub.s32 %s30, %s37
      %s100 = sor.u32 %s98, %s99
      %p101 = scmp.eq.s32.totalorder %s100, 0
      %s103 = sadd.s32 %s102, 1
      %s104 = scalar_select %p101, %s102, %s103
      %p107 = pneg %p101
      %p108 = scmp.eq.s32.totalorder %s22, 3
      %p109 = por %p107, %p108
      %p110 = scmp.ne.s32.totalorder %s102, %s105
      %p111 = scmp.eq.s32.totalorder %s22, 0
      %p112 = por %p110, %p111
      %p113 = scmp.ne.s32.totalorder %s102, %s105
      %p114 = scmp.eq.s32.totalorder %s27, 3
      %p115 = por %p113, %p114
      %p116 = scmp.ne.s32.totalorder %s105, %s106
      %p117 = scmp.eq.s32.totalorder %s27, 0
      %p118 = por %p116, %p117
      %p119 = scmp.ne.s32.totalorder %s105, %s106
      %p120 = scmp.eq.s32.totalorder %s28, 3
      %p121 = por %p119, %p120
      %p123 = scmp.ne.s32.totalorder %s106, %s122
      %p124 = scmp.eq.s32.totalorder %s28, 0
      %p125 = por %p123, %p124
      %s127 = sadd.s32 %s126, 1
      %p130 = scmp.eq.s32.totalorder %s22, 3
      %p131 = scmp.ne.s32.totalorder %s126, %s128
      %p132 = scmp.eq.s32.totalorder %s22, 0
      %p133 = por %p131, %p132
      %p134 = scmp.ne.s32.totalorder %s126, %s128
      %p135 = scmp.eq.s32.totalorder %s27, 3
      %p136 = por %p134, %p135
      %p137 = scmp.ne.s32.totalorder %s128, %s129
      %p138 = scmp.eq.s32.totalorder %s27, 0
      %p139 = por %p137, %p138
      %p140 = scmp.ne.s32.totalorder %s128, %s129
      %p141 = scmp.eq.s32.totalorder %s28, 3
      %p142 = por %p140, %p141
      %p144 = scmp.ne.s32.totalorder %s129, %s143
      %p145 = scmp.eq.s32.totalorder %s28, 0
      %p146 = por %p144, %p145
      %s148 = sadd.s32 %s147, 1
      %p151 = scmp.eq.s32.totalorder %s22, 3
      %p152 = scmp.ne.s32.totalorder %s147, %s149
      %p153 = scmp.eq.s32.totalorder %s22, 0
      %p154 = por %p152, %p153
      %p155 = scmp.ne.s32.totalorder %s147, %s149
      %p156 = scmp.eq.s32.totalorder %s27, 3
      %p157 = por %p155, %p156
      %p158 = scmp.ne.s32.totalorder %s149, %s150
      %p159 = scmp.eq.s32.totalorder %s27, 0
      %p160 = por %p158, %p159
      %p161 = scmp.ne.s32.totalorder %s149, %s150
      %p162 = scmp.eq.s32.totalorder %s28, 3
      %p163 = por %p161, %p162
      %p165 = scmp.ne.s32.totalorder %s150, %s164
      %p166 = scmp.eq.s32.totalorder %s28, 0
      %p167 = por %p165, %p166
      %s169 = sadd.s32 %s168, 1
      %p172 = scmp.eq.s32.totalorder %s22, 3
      %p173 = scmp.ne.s32.totalorder %s168, %s170
      %p174 = scmp.eq.s32.totalorder %s22, 0
      %p175 = por %p173, %p174
      %p176 = scmp.ne.s32.totalorder %s168, %s170
      %p177 = scmp.eq.s32.totalorder %s27, 3
      %p178 = por %p176, %p177
      %p179 = scmp.ne.s32.totalorder %s170, %s171
      %p180 = scmp.eq.s32.totalorder %s27, 0
      %p181 = por %p179, %p180
      %p182 = scmp.ne.s32.totalorder %s170, %s171
      %p183 = scmp.eq.s32.totalorder %s28, 3
      %p184 = por %p182, %p183
      %p186 = scmp.ne.s32.totalorder %s171, %s185
      %p187 = scmp.eq.s32.totalorder %s28, 0
      %p188 = por %p186, %p187
      %s190 = sadd.s32 %s189, 1
      %p193 = scmp.eq.s32.totalorder %s22, 3
      %p194 = scmp.ne.s32.totalorder %s189, %s191
      %p195 = scmp.eq.s32.totalorder %s22, 0
      %p196 = por %p194, %p195
      %p197 = scmp.ne.s32.totalorder %s189, %s191
      %p198 = scmp.eq.s32.totalorder %s27, 3
      %p199 = por %p197, %p198
      %p200 = scmp.ne.s32.totalorder %s191, %s192
      %p201 = scmp.eq.s32.totalorder %s27, 0
      %p202 = por %p200, %p201
      %p203 = scmp.ne.s32.totalorder %s191, %s192
      %p204 = scmp.eq.s32.totalorder %s28, 3
      %p205 = por %p203, %p204
      %p207 = scmp.ne.s32.totalorder %s192, %s206
      %p208 = scmp.eq.s32.totalorder %s28, 0
      %p209 = por %p207, %p208
      %s211 = sadd.s32 %s210, 1
      %p214 = scmp.eq.s32.totalorder %s22, 3
      %p215 = scmp.ne.s32.totalorder %s210, %s212
      %p216 = scmp.eq.s32.totalorder %s22, 0
      %p217 = por %p215, %p216
      %p218 = scmp.ne.s32.totalorder %s210, %s212
      %p219 = scmp.eq.s32.totalorder %s27, 3
      %p220 = por %p218, %p219
      %p221 = scmp.ne.s32.totalorder %s212, %s213
      %p222 = scmp.eq.s32.totalorder %s27, 0
      %p223 = por %p221, %p222
      %p224 = scmp.ne.s32.totalorder %s212, %s213
      %p225 = scmp.eq.s32.totalorder %s28, 3
      %p226 = por %p224, %p225
      %p228 = scmp.ne.s32.totalorder %s213, %s227
      %p229 = scmp.eq.s32.totalorder %s28, 0
      %p230 = por %p228, %p229
      %s232 = sadd.s32 %s231, 1
      %p235 = scmp.eq.s32.totalorder %s22, 3
      %p236 = scmp.ne.s32.totalorder %s231, %s233
      %p237 = scmp.eq.s32.totalorder %s22, 0
      %p238 = por %p236, %p237
      %p239 = scmp.ne.s32.totalorder %s231, %s233
      %p240 = scmp.eq.s32.totalorder %s27, 3
      %p241 = por %p239, %p240
      %p242 = scmp.ne.s32.totalorder %s233, %s234
      %p243 = scmp.eq.s32.totalorder %s27, 0
      %p244 = por %p242, %p243
      %p245 = scmp.ne.s32.totalorder %s233, %s234
      %p246 = scmp.eq.s32.totalorder %s28, 3
      %p247 = por %p245, %p246
      %p249 = scmp.ne.s32.totalorder %s234, %s248
      %p250 = scmp.eq.s32.totalorder %s28, 0
      %p251 = por %p249, %p250
      %s253 = sadd.s32 %s252, 1
      %p256 = scmp.eq.s32.totalorder %s22, 3
      %p257 = scmp.ne.s32.totalorder %s252, %s254
      %p258 = scmp.eq.s32.totalorder %s22, 0
      %p259 = por %p257, %p258
      %p260 = scmp.ne.s32.totalorder %s252, %s254
      %p261 = scmp.eq.s32.totalorder %s27, 3
      %p262 = por %p260, %p261
      %p263 = scmp.ne.s32.totalorder %s254, %s255
      %p264 = scmp.eq.s32.totalorder %s27, 0
      %p265 = por %p263, %p264
      %p266 = scmp.ne.s32.totalorder %s254, %s255
      %p267 = scmp.eq.s32.totalorder %s28, 3
      %p268 = por %p266, %p267
      %p270 = scmp.ne.s32.totalorder %s255, %s269
      %p271 = scmp.eq.s32.totalorder %s28, 0
      %p272 = por %p270, %p271
      %s274 = sadd.s32 %s273, 1
      %p277 = scmp.eq.s32.totalorder %s22, 3
      %p278 = scmp.ne.s32.totalorder %s273, %s275
      %p279 = scmp.eq.s32.totalorder %s22, 0
      %p280 = por %p278, %p279
      %p281 = scmp.ne.s32.totalorder %s273, %s275
      %p282 = scmp.eq.s32.totalorder %s27, 3
      %p283 = por %p281, %p282
      %p284 = scmp.ne.s32.totalorder %s275, %s276
      %p285 = scmp.eq.s32.totalorder %s27, 0
      %p286 = por %p284, %p285
      %p287 = scmp.ne.s32.totalorder %s275, %s276
      %p288 = scmp.eq.s32.totalorder %s28, 3
      %p289 = por %p287, %p288
      %p291 = scmp.ne.s32.totalorder %s276, %s290
      %p292 = scmp.eq.s32.totalorder %s28, 0
      %p293 = por %p291, %p292
      %s295 = sadd.s32 %s294, 1
      %p298 = scmp.eq.s32.totalorder %s22, 3
      %p299 = scmp.ne.s32.totalorder %s294, %s296
      %p300 = scmp.eq.s32.totalorder %s22, 0
      %p301 = por %p299, %p300
      %p302 = scmp.ne.s32.totalorder %s294, %s296
      %p303 = scmp.eq.s32.totalorder %s27, 3
      %p304 = por %p302, %p303
      %p305 = scmp.ne.s32.totalorder %s296, %s297
      %p306 = scmp.eq.s32.totalorder %s27, 0
      %p307 = por %p305, %p306
      %p308 = scmp.ne.s32.totalorder %s296, %s297
      %p309 = scmp.eq.s32.totalorder %s28, 3
      %p310 = por %p308, %p309
      %p312 = scmp.ne.s32.totalorder %s297, %s311
      %p313 = scmp.eq.s32.totalorder %s28, 0
      %p314 = por %p312, %p313
      %s316 = sadd.s32 %s315, 1
      %p319 = scmp.eq.s32.totalorder %s22, 3
      %p320 = scmp.ne.s32.totalorder %s315, %s317
      %p321 = scmp.eq.s32.totalorder %s22, 0
      %p322 = por %p320, %p321
      %p323 = scmp.ne.s32.totalorder %s315, %s317
      %p324 = scmp.eq.s32.totalorder %s27, 3
      %p325 = por %p323, %p324
      %p326 = scmp.ne.s32.totalorder %s317, %s318
      %p327 = scmp.eq.s32.totalorder %s27, 0
      %p328 = por %p326, %p327
      %p329 = scmp.ne.s32.totalorder %s317, %s318
      %p330 = scmp.eq.s32.totalorder %s28, 3
      %p331 = por %p329, %p330
      %p333 = scmp.ne.s32.totalorder %s318, %s332
      %p334 = scmp.eq.s32.totalorder %s28, 0
      %p335 = por %p333, %p334
      %s336 = ssub.s32 %s29, %s41
      %s337 = ssub.s32 %s30, %s37
      %s338 = sor.u32 %s336, %s337
      %p339 = scmp.eq.s32.totalorder %s338, 0
      %s341 = sadd.s32 %s340, 1
      %s342 = scalar_select %p339, %s340, %s341
      %p345 = pneg %p339
      %p346 = scmp.eq.s32.totalorder %s22, 3
      %p347 = por %p345, %p346
      %p348 = scmp.ne.s32.totalorder %s340, %s343
      %p349 = scmp.eq.s32.totalorder %s22, 0
      %p350 = por %p348, %p349
      %p351 = scmp.ne.s32.totalorder %s340, %s343
      %p352 = scmp.eq.s32.totalorder %s27, 3
      %p353 = por %p351, %p352
      %p354 = scmp.ne.s32.totalorder %s343, %s344
      %p355 = scmp.eq.s32.totalorder %s27, 0
      %p356 = por %p354, %p355
      %p357 = scmp.ne.s32.totalorder %s343, %s344
      %p358 = scmp.eq.s32.totalorder %s28, 3
      %p359 = por %p357, %p358
      %p361 = scmp.ne.s32.totalorder %s344, %s360
      %p362 = scmp.eq.s32.totalorder %s28, 0
      %p363 = por %p361, %p362
      %p364 = scmp.le.s32.totalorder 1, %s22
      %p365 = scmp.lt.s32.totalorder %s22, 5
      %p366 = pnand %p364, %p365
      %p367 = pneg %p366
      // Predicated region
      $region9: #{tpu_custom_call.1} parent=5 // pred_check
        _
      $region10: #{tpu_custom_call.1} parent=5 // pred_check_branch
        %369 = sbr.rel (%p366) target = $region12
      $region11: #{tpu_custom_call.1} parent=5 // pred_region
        %s370 = ssub.s32 %s22, 1
        // Predicated region
        $region13: #{tpu_custom_call.1} parent=11 // pred_check
          %p371 = pneg %p139
        $region14: #{tpu_custom_call.1} parent=11 // pred_check_branch
          %373 = sbr.rel (%p371) target = $region16
        $region15: #{tpu_custom_call.1} parent=11 // pred_region
          _
        $region16: #{tpu_custom_call.1} parent=11 // pred_fallthru
          _
        // Predicated region
        $region17: #{tpu_custom_call.1} parent=11 // pred_check
          %p374 = pneg %p160
        $region18: #{tpu_custom_call.1} parent=11 // pred_check_branch
          %376 = sbr.rel (%p374) target = $region20
        $region19: #{tpu_custom_call.1} parent=11 // pred_region
          _
        $region20: #{tpu_custom_call.1} parent=11 // pred_fallthru
          _
        // Predicated region
        $region21: #{tpu_custom_call.1} parent=11 // pred_check
          %p377 = pneg %p181
        $region22: #{tpu_custom_call.1} parent=11 // pred_check_branch
          %379 = sbr.rel (%p377) target = $region24
        $region23: #{tpu_custom_call.1} parent=11 // pred_region
          _
        $region24: #{tpu_custom_call.1} parent=11 // pred_fallthru
          _
        // Predicated region
        $region25: #{tpu_custom_call.1} parent=11 // pred_check
          %p380 = pneg %p202
        $region26: #{tpu_custom_call.1} parent=11 // pred_check_branch
          %382 = sbr.rel (%p380) target = $region28
        $region27: #{tpu_custom_call.1} parent=11 // pred_region
          _
        $region28: #{tpu_custom_call.1} parent=11 // pred_fallthru
          _
        // Predicated region
        $region29: #{tpu_custom_call.1} parent=11 // pred_check
          %p383 = pneg %p223
        $region30: #{tpu_custom_call.1} parent=11 // pred_check_branch
          %385 = sbr.rel (%p383) target = $region32
        $region31: #{tpu_custom_call.1} parent=11 // pred_region
          _
        $region32: #{tpu_custom_call.1} parent=11 // pred_fallthru
          _
        // Predicated region
        $region33: #{tpu_custom_call.1} parent=11 // pred_check
          %p386 = pneg %p244
        $region34: #{tpu_custom_call.1} parent=11 // pred_check_branch
          %388 = sbr.rel (%p386) target = $region36
        $region35: #{tpu_custom_call.1} parent=11 // pred_region
          _
        $region36: #{tpu_custom_call.1} parent=11 // pred_fallthru
          _
        // Predicated region
        $region37: #{tpu_custom_call.1} parent=11 // pred_check
          %p389 = pneg %p265
        $region38: #{tpu_custom_call.1} parent=11 // pred_check_branch
          %391 = sbr.rel (%p389) target = $region40
        $region39: #{tpu_custom_call.1} parent=11 // pred_region
          _
        $region40: #{tpu_custom_call.1} parent=11 // pred_fallthru
          _
        // Predicated region
        $region41: #{tpu_custom_call.1} parent=11 // pred_check
          %p392 = pneg %p286
        $region42: #{tpu_custom_call.1} parent=11 // pred_check_branch
          %394 = sbr.rel (%p392) target = $region44
        $region43: #{tpu_custom_call.1} parent=11 // pred_region
          _
        $region44: #{tpu_custom_call.1} parent=11 // pred_fallthru
          _
        // Predicated region
        $region45: #{tpu_custom_call.1} parent=11 // pred_check
          %p395 = pneg %p307
        $region46: #{tpu_custom_call.1} parent=11 // pred_check_branch
          %397 = sbr.rel (%p395) target = $region48
        $region47: #{tpu_custom_call.1} parent=11 // pred_region
          _
        $region48: #{tpu_custom_call.1} parent=11 // pred_fallthru
          _
        // Predicated region
        $region49: #{tpu_custom_call.1} parent=11 // pred_check
          %p398 = pneg %p328
        $region50: #{tpu_custom_call.1} parent=11 // pred_check_branch
          %400 = sbr.rel (%p398) target = $region52
        $region51: #{tpu_custom_call.1} parent=11 // pred_region
          _
        $region52: #{tpu_custom_call.1} parent=11 // pred_fallthru
          _
      $region12: #{tpu_custom_call.1} parent=5 // pred_fallthru
        _
      %p401 = scmp.lt.s32.totalorder %s22, 4
      // Predicated region
      $region53: #{tpu_custom_call.1} parent=5 // pred_check
        %p402 = pneg %p401
      $region54: #{tpu_custom_call.1} parent=5 // pred_check_branch
        %404 = sbr.rel (%p402) target = $region56
      $region55: #{tpu_custom_call.1} parent=5 // pred_region
        // Predicated region
        $region57: #{tpu_custom_call.1} parent=55 // pred_check
          %p405 = pneg %p56
        $region58: #{tpu_custom_call.1} parent=55 // pred_check_branch
          %407 = sbr.rel (%p405) target = $region60
        $region59: #{tpu_custom_call.1} parent=55 // pred_region
          %p408 = scmp.lt.s32.totalorder %s29, 1
          %s409 = scalar_select %p408, %s29, 1
          %p410 = scmp.lt.s32.totalorder %s30, 1
          %s411 = scalar_select %p410, %s30, 1
          %s412 = smul.addr %s409, 2
          %s413 = sadd.s32 %s411, %s412
          %s414 = smul.addr %s413, 4
          %s415 = scalar_lea.vmem %s0, %s414
        $region60: #{tpu_custom_call.1} parent=55 // pred_fallthru
          _
        // Predicated region
        $region61: #{tpu_custom_call.1} parent=55 // pred_check
          %p416 = pneg %p84
        $region62: #{tpu_custom_call.1} parent=55 // pred_check_branch
          %418 = sbr.rel (%p416) target = $region64
        $region63: #{tpu_custom_call.1} parent=55 // pred_region
          %p419 = scmp.lt.s32.totalorder %s29, 1
          %s420 = scalar_select %p419, %s29, 1
          %p421 = scmp.lt.s32.totalorder %s30, 1
          %s422 = scalar_select %p421, %s30, 1
          %s423 = smul.addr %s420, 2
          %s424 = sadd.s32 %s422, %s423
          %s425 = smul.addr %s424, 2
          %s426 = scalar_lea.vmem %s1, %s425
        $region64: #{tpu_custom_call.1} parent=55 // pred_fallthru
          _
        // Predicated region
        $region65: #{tpu_custom_call.1} parent=55 // pred_check
          %p427 = pneg %p112
        $region66: #{tpu_custom_call.1} parent=55 // pred_check_branch
          %429 = sbr.rel (%p427) target = $region68
        $region67: #{tpu_custom_call.1} parent=55 // pred_region
          %p430 = scmp.lt.s32.totalorder %s29, 1
          %s431 = scalar_select %p430, %s29, 1
          %p432 = scmp.lt.s32.totalorder %s30, 1
          %s433 = scalar_select %p432, %s30, 1
          %s434 = smul.addr %s431, 2
          %s435 = sadd.s32 %s433, %s434
          %s436 = smul.addr %s435, 2
          %s437 = scalar_lea.vmem %s2, %s436
        $region68: #{tpu_custom_call.1} parent=55 // pred_fallthru
          _
      $region56: #{tpu_custom_call.1} parent=5 // pred_fallthru
        _
      %p438 = scmp.le.s32.totalorder 1, %s22
      %p439 = scmp.lt.s32.totalorder %s22, 5
      %p440 = pnand %p438, %p439
      %p441 = pneg %p440
      // Predicated region
      $region69: #{tpu_custom_call.1} parent=5 // pred_check
        _
      $region70: #{tpu_custom_call.1} parent=5 // pred_check_branch
        %443 = sbr.rel (%p440) target = $region72
      $region71: #{tpu_custom_call.1} parent=5 // pred_region
        %s444 = ssub.s32 %s22, 1
        %p445 = scmp.lt.s32.totalorder %s31, 1
        %s446 = scalar_select %p445, %s31, 1
        %p447 = scmp.lt.s32.totalorder %s32, 1
        %s448 = scalar_select %p447, %s32, 1
        %s449 = smul.addr %s446, 2
        %s450 = sadd.s32 %s448, %s449
        %s451 = smul.addr %s450, 4
        %s452 = scalar_lea.vmem %s0, %s451
        %p453 = pneg %p62
        %p454 = pneg %p59
        %p455 = scmp.lt.s32.totalorder %s31, 1
        %s456 = scalar_select %p455, %s31, 1
        %p457 = scmp.lt.s32.totalorder %s32, 1
        %s458 = scalar_select %p457, %s32, 1
        %s459 = smul.addr %s456, 2
        %s460 = sadd.s32 %s458, %s459
        %s461 = smul.addr %s460, 2
        %s462 = scalar_lea.vmem %s1, %s461
        %p463 = pneg %p90
        %p464 = pneg %p87
        %p465 = scmp.lt.s32.totalorder %s31, 1
        %s466 = scalar_select %p465, %s31, 1
        %p467 = scmp.lt.s32.totalorder %s32, 1
        %s468 = scalar_select %p467, %s32, 1
        %s469 = smul.addr %s466, 2
        %s470 = sadd.s32 %s468, %s469
        %s471 = smul.addr %s470, 2
        %s472 = scalar_lea.vmem %s2, %s471
        %p473 = pneg %p118
        %p474 = pneg %p115
        %p475 = pneg %p139
        %p476 = pneg %p136
        %p477 = pneg %p160
        %p478 = pneg %p157
        %p479 = pneg %p181
        %p480 = pneg %p178
        %p481 = pneg %p202
        %p482 = pneg %p199
        %p483 = pneg %p223
        %p484 = pneg %p220
        %p485 = pneg %p244
        %p486 = pneg %p241
        %p487 = pneg %p265
        %p488 = pneg %p262
        %p489 = pneg %p286
        %p490 = pneg %p283
        %p491 = pneg %p307
        %p492 = pneg %p304
        %p493 = pneg %p328
        %p494 = pneg %p325
        %p495 = pneg %p356
        %p496 = pneg %p353
        %s497 = sand.u32 %s343, 1
        %s498 = scalar_lea.sflag [#allocation3], %s497
        %s499 = sand.u32 %s343, 1
        %s500 = smul.addr %s499, 4
        %s501 = scalar_lea.vmem [#allocation2], %s500
        %p502 = scmp.lt.s32.totalorder %s31, 1
        %s503 = scalar_select %p502, %s31, 1
        %p504 = scmp.lt.s32.totalorder %s32, 1
        %s505 = scalar_select %p504, %s32, 1
        %s506 = smul.addr %s503, 2
        %s507 = sadd.s32 %s505, %s506
        %s508 = smul.addr %s507, 4
        %s509 = scalar_lea.vmem %s0, %s508
        %p510 = scmp.lt.s32.totalorder %s31, 1
        %s511 = scalar_select %p510, %s31, 1
        %p512 = scmp.lt.s32.totalorder %s32, 1
        %s513 = scalar_select %p512, %s32, 1
        %s514 = smul.addr %s511, 2
        %s515 = sadd.s32 %s513, %s514
        %s516 = smul.addr %s515, 2
        %s517 = scalar_lea.vmem %s1, %s516
        %p518 = scmp.lt.s32.totalorder %s31, 1
        %s519 = scalar_select %p518, %s31, 1
        %p520 = scmp.lt.s32.totalorder %s32, 1
        %s521 = scalar_select %p520, %s32, 1
        %s522 = smul.addr %s519, 2
        %s523 = sadd.s32 %s521, %s522
        %s524 = smul.addr %s523, 2
        %s525 = scalar_lea.vmem %s2, %s524
        %v526 = vld [vmem:[%s509] sm:$0xf]
        %v527 = vld [vmem:[%s517] sm:$0x3]
        %v528 = vld [vmem:[%s525] sm:$0x3]
        %v529 = vld [vmem:[%s3] sm:$0xff]
        %v530 = vld [vmem:[%s4] sm:$0xff]
        %vm531 = vcmask 15360
        %v533 = vsel %vm531, %v530, 0
        %vm535 = vcmask 1041408
        %v537 = vsel %vm535, %v527, 0
        %539 = vmatprep.subr.mxu0 0.0
        %540 = vmatpush1.msra.mxu0 0.0
        %541 = vmatprep.subr.mxu0 0.0
        %542 = vmatpush1.msra.mxu0 0.0
        %543 = vmatprep.subr.mxu0 0.0
        %544 = vmatpush1.msra.mxu0 0.0
        %545 = vmatprep.subr.mxu0 0.0
        %546 = vmatpush1.msra.mxu0 0.0
        %547 = vmatprep.subr.mxu0 0.0
        %548 = vmatpush1.msra.mxu0 0.0
        %549 = vmatprep.subr.mxu0 0.0
        %550 = vmatpush1.msra.mxu0 0.0
        %551 = vmatprep.subr.mxu0 0.0
        %552 = vmatpush1.msra.mxu0 0.0
        %553 = vmatprep.subr.mxu0 0.0
        %554 = vmatpush1.msra.mxu0 0.0
        %555 = vmatprep.subr.mxu0 0.0
        %556 = vmatpush1.msra.mxu0 0.0
        %557 = vmatprep.subr.mxu0 0.0
        %558 = vmatpush1.msra.mxu0 0.0
        %559 = vmatprep.subr.mxu0 0.0
        %560 = vmatpush1.msra.mxu0 0.0
        %561 = vmatprep.subr.mxu0 0.0
        %562 = vmatpush1.msra.mxu0 0.0
        %563 = vmatprep.subr.mxu0 0.0
        %564 = vmatpush1.msra.mxu0 0.0
        %565 = vmatprep.subr.mxu0 0.0
        %566 = vmatpush1.msra.mxu0 0.0
        %567 = vmatprep.subr.mxu0 0.0
        %568 = vmatpush1.msra.mxu0 0.0
        %569 = vmatprep.subr.mxu0 0.0
        %570 = vmatpush1.msra.mxu0 %v537
        %571 = vmatprep.subr.mxu0 0.0
        %572 = vmatpush2.msra.mxu0 0.0
        %573 = vmatprep.subr.mxu0 0.0
        %574 = vmatpush2.msra.mxu0 0.0
        %575 = vmatprep.subr.mxu0 0.0
        %576 = vmatpush2.msra.mxu0 0.0
        %577 = vmatprep.subr.mxu0 0.0
        %578 = vmatpush2.msra.mxu0 0.0
        %579 = vmatprep.subr.mxu0 0.0
        %580 = vmatpush2.msra.mxu0 0.0
        %581 = vmatprep.subr.mxu0 0.0
        %582 = vmatpush2.msra.mxu0 0.0
        %583 = vmatprep.subr.mxu0 0.0
        %584 = vmatpush2.msra.mxu0 0.0
        %585 = vmatprep.subr.mxu0 0.0
        %586 = vmatpush2.msra.mxu0 0.0
        %587 = vmatprep.subr.mxu0 0.0
        %588 = vmatpush2.msra.mxu0 0.0
        %589 = vmatprep.subr.mxu0 0.0
        %590 = vmatpush2.msra.mxu0 0.0
        %591 = vmatprep.subr.mxu0 0.0
        %592 = vmatpush2.msra.mxu0 0.0
        %593 = vmatprep.subr.mxu0 0.0
        %594 = vmatpush2.msra.mxu0 0.0
        %595 = vmatprep.subr.mxu0 0.0
        %596 = vmatpush2.msra.mxu0 0.0
        %597 = vmatprep.subr.mxu0 0.0
        %598 = vmatpush2.msra.mxu0 0.0
        %599 = vmatprep.subr.mxu0 0.0
        %600 = vmatpush2.msra.mxu0 0.0
        %601 = vmatprep.subr.mxu0 0.0
        %602 = vmatpush2.msra.mxu0 0.0
        %603 = vmatprep.mubr.f32.mxu0 0.0
        %604 = vmatmul.mubr.f32.gmra.mxu0 %v533
        %v605 = vpop.f32.mrf.mxu0
        %v606 = vadd.f32 0.0, %v605
        %v607 = vpop.f32.mrf.mxu0
        %608 = vdwg.mxu0
        %vm609 = vcmask 31744
        %v611 = vsel %vm609, %v529, 0
        %vm613 = vcmask 1043456
        %v615 = vsel %vm613, %v526, 0
        %617 = vmatprep.subr.mxu0 0.0
        %618 = vmatpush1.msra.mxu0 0.0
        %619 = vmatprep.subr.mxu0 0.0
        %620 = vmatpush1.msra.mxu0 0.0
        %621 = vmatprep.subr.mxu0 0.0
        %622 = vmatpush1.msra.mxu0 0.0
        %623 = vmatprep.subr.mxu0 0.0
        %624 = vmatpush1.msra.mxu0 0.0
        %625 = vmatprep.subr.mxu0 0.0
        %626 = vmatpush1.msra.mxu0 0.0
        %627 = vmatprep.subr.mxu0 0.0
        %628 = vmatpush1.msra.mxu0 0.0
        %629 = vmatprep.subr.mxu0 0.0
        %630 = vmatpush1.msra.mxu0 0.0
        %631 = vmatprep.subr.mxu0 0.0
        %632 = vmatpush1.msra.mxu0 0.0
        %633 = vmatprep.subr.mxu0 0.0
        %634 = vmatpush1.msra.mxu0 0.0
        %635 = vmatprep.subr.mxu0 0.0
        %636 = vmatpush1.msra.mxu0 0.0
        %637 = vmatprep.subr.mxu0 0.0
        %638 = vmatpush1.msra.mxu0 0.0
        %639 = vmatprep.subr.mxu0 0.0
        %640 = vmatpush1.msra.mxu0 0.0
        %641 = vmatprep.subr.mxu0 0.0
        %642 = vmatpush1.msra.mxu0 0.0
        %643 = vmatprep.subr.mxu0 0.0
        %644 = vmatpush1.msra.mxu0 0.0
        %645 = vmatprep.subr.mxu0 0.0
        %646 = vmatpush1.msra.mxu0 0.0
        %647 = vmatprep.subr.mxu0 0.0
        %648 = vmatpush1.msra.mxu0 %v615
        %649 = vmatprep.subr.mxu0 0.0
        %650 = vmatpush2.msra.mxu0 0.0
        %651 = vmatprep.subr.mxu0 0.0
        %652 = vmatpush2.msra.mxu0 0.0
        %653 = vmatprep.subr.mxu0 0.0
        %654 = vmatpush2.msra.mxu0 0.0
        %655 = vmatprep.subr.mxu0 0.0
        %656 = vmatpush2.msra.mxu0 0.0
        %657 = vmatprep.subr.mxu0 0.0
        %658 = vmatpush2.msra.mxu0 0.0
        %659 = vmatprep.subr.mxu0 0.0
        %660 = vmatpush2.msra.mxu0 0.0
        %661 = vmatprep.subr.mxu0 0.0
        %662 = vmatpush2.msra.mxu0 0.0
        %663 = vmatprep.subr.mxu0 0.0
        %664 = vmatpush2.msra.mxu0 0.0
        %665 = vmatprep.subr.mxu0 0.0
        %666 = vmatpush2.msra.mxu0 0.0
        %667 = vmatprep.subr.mxu0 0.0
        %668 = vmatpush2.msra.mxu0 0.0
        %669 = vmatprep.subr.mxu0 0.0
        %670 = vmatpush2.msra.mxu0 0.0
        %671 = vmatprep.subr.mxu0 0.0
        %672 = vmatpush2.msra.mxu0 0.0
        %673 = vmatprep.subr.mxu0 0.0
        %674 = vmatpush2.msra.mxu0 0.0
        %675 = vmatprep.subr.mxu0 0.0
        %676 = vmatpush2.msra.mxu0 0.0
        %677 = vmatprep.subr.mxu0 0.0
        %678 = vmatpush2.msra.mxu0 0.0
        %679 = vmatprep.subr.mxu0 0.0
        %680 = vmatpush2.msra.mxu0 0.0
        %681 = vmatprep.mubr.f32.mxu0 0.0
        %682 = vmatmul.mubr.f32.gmra.mxu0 %v611
        %v683 = vpop.f32.mrf.mxu0
        %v684 = vadd.f32 %v606, %v683
        %v685 = vpop.f32.mrf.mxu0
        %686 = vdwg.mxu0
        %v687 = vld [vmem:[%s5] sm:$0xff]
        %v689 = vsel %vm531, %v687, 0
        %v692 = vsel %vm535, %v528, 0
        %694 = vmatprep.subr.mxu0 0.0
        %695 = vmatpush1.msra.mxu0 0.0
        %696 = vmatprep.subr.mxu0 0.0
        %697 = vmatpush1.msra.mxu0 0.0
        %698 = vmatprep.subr.mxu0 0.0
        %699 = vmatpush1.msra.mxu0 0.0
        %700 = vmatprep.subr.mxu0 0.0
        %701 = vmatpush1.msra.mxu0 0.0
        %702 = vmatprep.subr.mxu0 0.0
        %703 = vmatpush1.msra.mxu0 0.0
        %704 = vmatprep.subr.mxu0 0.0
        %705 = vmatpush1.msra.mxu0 0.0
        %706 = vmatprep.subr.mxu0 0.0
        %707 = vmatpush1.msra.mxu0 0.0
        %708 = vmatprep.subr.mxu0 0.0
        %709 = vmatpush1.msra.mxu0 0.0
        %710 = vmatprep.subr.mxu0 0.0
        %711 = vmatpush1.msra.mxu0 0.0
        %712 = vmatprep.subr.mxu0 0.0
        %713 = vmatpush1.msra.mxu0 0.0
        %714 = vmatprep.subr.mxu0 0.0
        %715 = vmatpush1.msra.mxu0 0.0
        %716 = vmatprep.subr.mxu0 0.0
        %717 = vmatpush1.msra.mxu0 0.0
        %718 = vmatprep.subr.mxu0 0.0
        %719 = vmatpush1.msra.mxu0 0.0
        %720 = vmatprep.subr.mxu0 0.0
        %721 = vmatpush1.msra.mxu0 0.0
        %722 = vmatprep.subr.mxu0 0.0
        %723 = vmatpush1.msra.mxu0 0.0
        %724 = vmatprep.subr.mxu0 0.0
        %725 = vmatpush1.msra.mxu0 %v692
        %726 = vmatprep.subr.mxu0 0.0
        %727 = vmatpush2.msra.mxu0 0.0
        %728 = vmatprep.subr.mxu0 0.0
        %729 = vmatpush2.msra.mxu0 0.0
        %730 = vmatprep.subr.mxu0 0.0
        %731 = vmatpush2.msra.mxu0 0.0
        %732 = vmatprep.subr.mxu0 0.0
        %733 = vmatpush2.msra.mxu0 0.0
        %734 = vmatprep.subr.mxu0 0.0
        %735 = vmatpush2.msra.mxu0 0.0
        %736 = vmatprep.subr.mxu0 0.0
        %737 = vmatpush2.msra.mxu0 0.0
        %738 = vmatprep.subr.mxu0 0.0
        %739 = vmatpush2.msra.mxu0 0.0
        %740 = vmatprep.subr.mxu0 0.0
        %741 = vmatpush2.msra.mxu0 0.0
        %742 = vmatprep.subr.mxu0 0.0
        %743 = vmatpush2.msra.mxu0 0.0
        %744 = vmatprep.subr.mxu0 0.0
        %745 = vmatpush2.msra.mxu0 0.0
        %746 = vmatprep.subr.mxu0 0.0
        %747 = vmatpush2.msra.mxu0 0.0
        %748 = vmatprep.subr.mxu0 0.0
        %749 = vmatpush2.msra.mxu0 0.0
        %750 = vmatprep.subr.mxu0 0.0
        %751 = vmatpush2.msra.mxu0 0.0
        %752 = vmatprep.subr.mxu0 0.0
        %753 = vmatpush2.msra.mxu0 0.0
        %754 = vmatprep.subr.mxu0 0.0
        %755 = vmatpush2.msra.mxu0 0.0
        %756 = vmatprep.subr.mxu0 0.0
        %757 = vmatpush2.msra.mxu0 0.0
        %758 = vmatprep.mubr.f32.mxu0 0.0
        %759 = vmatmul.mubr.f32.gmra.mxu0 %v689
        %v760 = vpop.f32.mrf.mxu0
        %v761 = vadd.f32 0.0, %v760
        %v762 = vpop.f32.mrf.mxu0
        %763 = vdwg.mxu0
        %v764 = vadd.f32 %v684, %v761
        %v765 = vld [vmem:[%s6] sm:$0xff]
        %767 = vset.pattern.permute.xlu0 0
        %768 = vperm.xlu0 %767, %v765
        %v769 = vpop.permute.xlu0 %768
        %v771 = vadd.f32 %v764, %v769
        %v772 = vmax.f32 %v771, 0.0
        %v773 = vld [vmem:[%s7] sm:$0xf]
        %v774 = vld [vmem:[%s8] sm:$0xf]
        %776 = vset.pattern.permute.xlu0 0
        %777 = vperm.xlu0 %776, %v774
        %v778 = vpop.permute.xlu0 %777
        %vm780 = vcmask 64512
        %v782 = vsel %vm780, %v773, 0
        %784 = vmatprep.subr.mxu0 0.0
        %785 = vmatpush1.msra.mxu0 0.0
        %786 = vmatprep.subr.mxu0 0.0
        %787 = vmatpush1.msra.mxu0 0.0
        %788 = vmatprep.subr.mxu0 0.0
        %789 = vmatpush1.msra.mxu0 0.0
        %790 = vmatprep.subr.mxu0 0.0
        %791 = vmatpush1.msra.mxu0 0.0
        %792 = vmatprep.subr.mxu0 0.0
        %793 = vmatpush1.msra.mxu0 0.0
        %794 = vmatprep.subr.mxu0 0.0
        %795 = vmatpush1.msra.mxu0 0.0
        %796 = vmatprep.subr.mxu0 0.0
        %797 = vmatpush1.msra.mxu0 0.0
        %798 = vmatprep.subr.mxu0 0.0
        %799 = vmatpush1.msra.mxu0 0.0
        %800 = vmatprep.subr.mxu0 0.0
        %801 = vmatpush1.msra.mxu0 0.0
        %802 = vmatprep.subr.mxu0 0.0
        %803 = vmatpush1.msra.mxu0 0.0
        %804 = vmatprep.subr.mxu0 0.0
        %805 = vmatpush1.msra.mxu0 0.0
        %806 = vmatprep.subr.mxu0 0.0
        %807 = vmatpush1.msra.mxu0 0.0
        %808 = vmatprep.subr.mxu0 0.0
        %809 = vmatpush1.msra.mxu0 0.0
        %810 = vmatprep.subr.mxu0 0.0
        %811 = vmatpush1.msra.mxu0 0.0
        %812 = vmatprep.subr.mxu0 0.0
        %813 = vmatpush1.msra.mxu0 0.0
        %814 = vmatprep.subr.mxu0 0.0
        %815 = vmatpush1.msra.mxu0 %v772
        %816 = vmatprep.subr.mxu0 0.0
        %817 = vmatpush2.msra.mxu0 0.0
        %818 = vmatprep.subr.mxu0 0.0
        %819 = vmatpush2.msra.mxu0 0.0
        %820 = vmatprep.subr.mxu0 0.0
        %821 = vmatpush2.msra.mxu0 0.0
        %822 = vmatprep.subr.mxu0 0.0
        %823 = vmatpush2.msra.mxu0 0.0
        %824 = vmatprep.subr.mxu0 0.0
        %825 = vmatpush2.msra.mxu0 0.0
        %826 = vmatprep.subr.mxu0 0.0
        %827 = vmatpush2.msra.mxu0 0.0
        %828 = vmatprep.subr.mxu0 0.0
        %829 = vmatpush2.msra.mxu0 0.0
        %830 = vmatprep.subr.mxu0 0.0
        %831 = vmatpush2.msra.mxu0 0.0
        %832 = vmatprep.subr.mxu0 0.0
        %833 = vmatpush2.msra.mxu0 0.0
        %834 = vmatprep.subr.mxu0 0.0
        %835 = vmatpush2.msra.mxu0 0.0
        %836 = vmatprep.subr.mxu0 0.0
        %837 = vmatpush2.msra.mxu0 0.0
        %838 = vmatprep.subr.mxu0 0.0
        %839 = vmatpush2.msra.mxu0 0.0
        %840 = vmatprep.subr.mxu0 0.0
        %841 = vmatpush2.msra.mxu0 0.0
        %842 = vmatprep.subr.mxu0 0.0
        %843 = vmatpush2.msra.mxu0 0.0
        %844 = vmatprep.subr.mxu0 0.0
        %845 = vmatpush2.msra.mxu0 0.0
        %846 = vmatprep.subr.mxu0 0.0
        %847 = vmatpush2.msra.mxu0 0.0
        %848 = vmatprep.mubr.f32.mxu0 0.0
        %849 = vmatmul.mubr.f32.gmra.mxu0 %v782
        %v850 = vpop.f32.mrf.mxu0
        %v851 = vadd.f32 %v778, %v850
        %v852 = vpop.f32.mrf.mxu0
        %853 = vdwg.mxu0
        %v854 = vmax.f32 %v851, 0.0
        %v855 = vadd.f32 %v854, %v526
        %v856 = vld [vmem:[%s9] sm:$0xf]
        %v857 = vld [vmem:[%s12] sm:$0xf]
        %859 = vset.pattern.permute.xlu0 0
        %860 = vperm.xlu0 %859, %v857
        %v861 = vpop.permute.xlu0 %860
        %v864 = vsel %vm609, %v856, 0
        %v867 = vsel %vm613, %v855, 0
        %869 = vmatprep.subr.mxu0 0.0
        %870 = vmatpush1.msra.mxu0 0.0
        %871 = vmatprep.subr.mxu0 0.0
        %872 = vmatpush1.msra.mxu0 0.0
        %873 = vmatprep.subr.mxu0 0.0
        %874 = vmatpush1.msra.mxu0 0.0
        %875 = vmatprep.subr.mxu0 0.0
        %876 = vmatpush1.msra.mxu0 0.0
        %877 = vmatprep.subr.mxu0 0.0
        %878 = vmatpush1.msra.mxu0 0.0
        %879 = vmatprep.subr.mxu0 0.0
        %880 = vmatpush1.msra.mxu0 0.0
        %881 = vmatprep.subr.mxu0 0.0
        %882 = vmatpush1.msra.mxu0 0.0
        %883 = vmatprep.subr.mxu0 0.0
        %884 = vmatpush1.msra.mxu0 0.0
        %885 = vmatprep.subr.mxu0 0.0
        %886 = vmatpush1.msra.mxu0 0.0
        %887 = vmatprep.subr.mxu0 0.0
        %888 = vmatpush1.msra.mxu0 0.0
        %889 = vmatprep.subr.mxu0 0.0
        %890 = vmatpush1.msra.mxu0 0.0
        %891 = vmatprep.subr.mxu0 0.0
        %892 = vmatpush1.msra.mxu0 0.0
        %893 = vmatprep.subr.mxu0 0.0
        %894 = vmatpush1.msra.mxu0 0.0
        %895 = vmatprep.subr.mxu0 0.0
        %896 = vmatpush1.msra.mxu0 0.0
        %897 = vmatprep.subr.mxu0 0.0
        %898 = vmatpush1.msra.mxu0 0.0
        %899 = vmatprep.subr.mxu0 0.0
        %900 = vmatpush1.msra.mxu0 %v867
        %901 = vmatprep.subr.mxu0 0.0
        %902 = vmatpush2.msra.mxu0 0.0
        %903 = vmatprep.subr.mxu0 0.0
        %904 = vmatpush2.msra.mxu0 0.0
        %905 = vmatprep.subr.mxu0 0.0
        %906 = vmatpush2.msra.mxu0 0.0
        %907 = vmatprep.subr.mxu0 0.0
        %908 = vmatpush2.msra.mxu0 0.0
        %909 = vmatprep.subr.mxu0 0.0
        %910 = vmatpush2.msra.mxu0 0.0
        %911 = vmatprep.subr.mxu0 0.0
        %912 = vmatpush2.msra.mxu0 0.0
        %913 = vmatprep.subr.mxu0 0.0
        %914 = vmatpush2.msra.mxu0 0.0
        %915 = vmatprep.subr.mxu0 0.0
        %916 = vmatpush2.msra.mxu0 0.0
        %917 = vmatprep.subr.mxu0 0.0
        %918 = vmatpush2.msra.mxu0 0.0
        %919 = vmatprep.subr.mxu0 0.0
        %920 = vmatpush2.msra.mxu0 0.0
        %921 = vmatprep.subr.mxu0 0.0
        %922 = vmatpush2.msra.mxu0 0.0
        %923 = vmatprep.subr.mxu0 0.0
        %924 = vmatpush2.msra.mxu0 0.0
        %925 = vmatprep.subr.mxu0 0.0
        %926 = vmatpush2.msra.mxu0 0.0
        %927 = vmatprep.subr.mxu0 0.0
        %928 = vmatpush2.msra.mxu0 0.0
        %929 = vmatprep.subr.mxu0 0.0
        %930 = vmatpush2.msra.mxu0 0.0
        %931 = vmatprep.subr.mxu0 0.0
        %932 = vmatpush2.msra.mxu0 0.0
        %933 = vmatprep.mubr.f32.mxu0 0.0
        %934 = vmatmul.mubr.f32.gmra.mxu0 %v864
        %v935 = vpop.f32.mrf.mxu0
        %v936 = vadd.f32 %v861, %v935
        %v937 = vpop.f32.mrf.mxu0
        %938 = vdwg.mxu0
        %v939 = vmax.f32 %v936, 0.0
        %v940 = vld [vmem:[%s10] sm:$0xf]
        %v942 = vsel %vm531, %v940, 0
        %944 = vmatprep.subr.mxu0 0.0
        %945 = vmatpush1.msra.mxu0 0.0
        %946 = vmatprep.subr.mxu0 0.0
        %947 = vmatpush1.msra.mxu0 0.0
        %948 = vmatprep.subr.mxu0 0.0
        %949 = vmatpush1.msra.mxu0 0.0
        %950 = vmatprep.subr.mxu0 0.0
        %951 = vmatpush1.msra.mxu0 0.0
        %952 = vmatprep.subr.mxu0 0.0
        %953 = vmatpush1.msra.mxu0 0.0
        %954 = vmatprep.subr.mxu0 0.0
        %955 = vmatpush1.msra.mxu0 0.0
        %956 = vmatprep.subr.mxu0 0.0
        %957 = vmatpush1.msra.mxu0 0.0
        %958 = vmatprep.subr.mxu0 0.0
        %959 = vmatpush1.msra.mxu0 0.0
        %960 = vmatprep.subr.mxu0 0.0
        %961 = vmatpush1.msra.mxu0 0.0
        %962 = vmatprep.subr.mxu0 0.0
        %963 = vmatpush1.msra.mxu0 0.0
        %964 = vmatprep.subr.mxu0 0.0
        %965 = vmatpush1.msra.mxu0 0.0
        %966 = vmatprep.subr.mxu0 0.0
        %967 = vmatpush1.msra.mxu0 0.0
        %968 = vmatprep.subr.mxu0 0.0
        %969 = vmatpush1.msra.mxu0 0.0
        %970 = vmatprep.subr.mxu0 0.0
        %971 = vmatpush1.msra.mxu0 0.0
        %972 = vmatprep.subr.mxu0 0.0
        %973 = vmatpush1.msra.mxu0 0.0
        %974 = vmatprep.subr.mxu0 0.0
        %975 = vmatpush1.msra.mxu0 %v537
        %976 = vmatprep.subr.mxu0 0.0
        %977 = vmatpush2.msra.mxu0 0.0
        %978 = vmatprep.subr.mxu0 0.0
        %979 = vmatpush2.msra.mxu0 0.0
        %980 = vmatprep.subr.mxu0 0.0
        %981 = vmatpush2.msra.mxu0 0.0
        %982 = vmatprep.subr.mxu0 0.0
        %983 = vmatpush2.msra.mxu0 0.0
        %984 = vmatprep.subr.mxu0 0.0
        %985 = vmatpush2.msra.mxu0 0.0
        %986 = vmatprep.subr.mxu0 0.0
        %987 = vmatpush2.msra.mxu0 0.0
        %988 = vmatprep.subr.mxu0 0.0
        %989 = vmatpush2.msra.mxu0 0.0
        %990 = vmatprep.subr.mxu0 0.0
        %991 = vmatpush2.msra.mxu0 0.0
        %992 = vmatprep.subr.mxu0 0.0
        %993 = vmatpush2.msra.mxu0 0.0
        %994 = vmatprep.subr.mxu0 0.0
        %995 = vmatpush2.msra.mxu0 0.0
        %996 = vmatprep.subr.mxu0 0.0
        %997 = vmatpush2.msra.mxu0 0.0
        %998 = vmatprep.subr.mxu0 0.0
        %999 = vmatpush2.msra.mxu0 0.0
        %1000 = vmatprep.subr.mxu0 0.0
        %1001 = vmatpush2.msra.mxu0 0.0
        %1002 = vmatprep.subr.mxu0 0.0
        %1003 = vmatpush2.msra.mxu0 0.0
        %1004 = vmatprep.subr.mxu0 0.0
        %1005 = vmatpush2.msra.mxu0 0.0
        %1006 = vmatprep.subr.mxu0 0.0
        %1007 = vmatpush2.msra.mxu0 0.0
        %1008 = vmatprep.mubr.f32.mxu0 0.0
        %1009 = vmatmul.mubr.f32.gmra.mxu0 %v942
        %v1010 = vpop.f32.mrf.mxu0
        %v1011 = vadd.f32 0.0, %v1010
        %v1012 = vpop.f32.mrf.mxu0
        %1013 = vdwg.mxu0
        %v1015 = vsel %vm613, %v939, 0
        %1017 = vmatprep.subr.mxu0 0.0
        %1018 = vmatpush1.msra.mxu0 0.0
        %1019 = vmatprep.subr.mxu0 0.0
        %1020 = vmatpush1.msra.mxu0 0.0
        %1021 = vmatprep.subr.mxu0 0.0
        %1022 = vmatpush1.msra.mxu0 0.0
        %1023 = vmatprep.subr.mxu0 0.0
        %1024 = vmatpush1.msra.mxu0 0.0
        %1025 = vmatprep.subr.mxu0 0.0
        %1026 = vmatpush1.msra.mxu0 0.0
        %1027 = vmatprep.subr.mxu0 0.0
        %1028 = vmatpush1.msra.mxu0 0.0
        %1029 = vmatprep.subr.mxu0 0.0
        %1030 = vmatpush1.msra.mxu0 0.0
        %1031 = vmatprep.subr.mxu0 0.0
        %1032 = vmatpush1.msra.mxu0 0.0
        %1033 = vmatprep.subr.mxu0 0.0
        %1034 = vmatpush1.msra.mxu0 0.0
        %1035 = vmatprep.subr.mxu0 0.0
        %1036 = vmatpush1.msra.mxu0 0.0
        %1037 = vmatprep.subr.mxu0 0.0
        %1038 = vmatpush1.msra.mxu0 0.0
        %1039 = vmatprep.subr.mxu0 0.0
        %1040 = vmatpush1.msra.mxu0 0.0
        %1041 = vmatprep.subr.mxu0 0.0
        %1042 = vmatpush1.msra.mxu0 0.0
        %1043 = vmatprep.subr.mxu0 0.0
        %1044 = vmatpush1.msra.mxu0 0.0
        %1045 = vmatprep.subr.mxu0 0.0
        %1046 = vmatpush1.msra.mxu0 0.0
        %1047 = vmatprep.subr.mxu0 0.0
        %1048 = vmatpush1.msra.mxu0 %v1015
        %1049 = vmatprep.subr.mxu0 0.0
        %1050 = vmatpush2.msra.mxu0 0.0
        %1051 = vmatprep.subr.mxu0 0.0
        %1052 = vmatpush2.msra.mxu0 0.0
        %1053 = vmatprep.subr.mxu0 0.0
        %1054 = vmatpush2.msra.mxu0 0.0
        %1055 = vmatprep.subr.mxu0 0.0
        %1056 = vmatpush2.msra.mxu0 0.0
        %1057 = vmatprep.subr.mxu0 0.0
        %1058 = vmatpush2.msra.mxu0 0.0
        %1059 = vmatprep.subr.mxu0 0.0
        %1060 = vmatpush2.msra.mxu0 0.0
        %1061 = vmatprep.subr.mxu0 0.0
        %1062 = vmatpush2.msra.mxu0 0.0
        %1063 = vmatprep.subr.mxu0 0.0
        %1064 = vmatpush2.msra.mxu0 0.0
        %1065 = vmatprep.subr.mxu0 0.0
        %1066 = vmatpush2.msra.mxu0 0.0
        %1067 = vmatprep.subr.mxu0 0.0
        %1068 = vmatpush2.msra.mxu0 0.0
        %1069 = vmatprep.subr.mxu0 0.0
        %1070 = vmatpush2.msra.mxu0 0.0
        %1071 = vmatprep.subr.mxu0 0.0
        %1072 = vmatpush2.msra.mxu0 0.0
        %1073 = vmatprep.subr.mxu0 0.0
        %1074 = vmatpush2.msra.mxu0 0.0
        %1075 = vmatprep.subr.mxu0 0.0
        %1076 = vmatpush2.msra.mxu0 0.0
        %1077 = vmatprep.subr.mxu0 0.0
        %1078 = vmatpush2.msra.mxu0 0.0
        %1079 = vmatprep.subr.mxu0 0.0
        %1080 = vmatpush2.msra.mxu0 0.0
        %1081 = vmatprep.mubr.f32.mxu0 0.0
        %1082 = vmatmul.mubr.f32.gmra.mxu0 %v864
        %v1083 = vpop.f32.mrf.mxu0
        %v1084 = vadd.f32 %v1011, %v1083
        %v1085 = vpop.f32.mrf.mxu0
        %1086 = vdwg.mxu0
        %v1087 = vld [vmem:[%s11] sm:$0xf]
        %v1089 = vsel %vm531, %v1087, 0
        %1091 = vmatprep.subr.mxu0 0.0
        %1092 = vmatpush1.msra.mxu0 0.0
        %1093 = vmatprep.subr.mxu0 0.0
        %1094 = vmatpush1.msra.mxu0 0.0
        %1095 = vmatprep.subr.mxu0 0.0
        %1096 = vmatpush1.msra.mxu0 0.0
        %1097 = vmatprep.subr.mxu0 0.0
        %1098 = vmatpush1.msra.mxu0 0.0
        %1099 = vmatprep.subr.mxu0 0.0
        %1100 = vmatpush1.msra.mxu0 0.0
        %1101 = vmatprep.subr.mxu0 0.0
        %1102 = vmatpush1.msra.mxu0 0.0
        %1103 = vmatprep.subr.mxu0 0.0
        %1104 = vmatpush1.msra.mxu0 0.0
        %1105 = vmatprep.subr.mxu0 0.0
        %1106 = vmatpush1.msra.mxu0 0.0
        %1107 = vmatprep.subr.mxu0 0.0
        %1108 = vmatpush1.msra.mxu0 0.0
        %1109 = vmatprep.subr.mxu0 0.0
        %1110 = vmatpush1.msra.mxu0 0.0
        %1111 = vmatprep.subr.mxu0 0.0
        %1112 = vmatpush1.msra.mxu0 0.0
        %1113 = vmatprep.subr.mxu0 0.0
        %1114 = vmatpush1.msra.mxu0 0.0
        %1115 = vmatprep.subr.mxu0 0.0
        %1116 = vmatpush1.msra.mxu0 0.0
        %1117 = vmatprep.subr.mxu0 0.0
        %1118 = vmatpush1.msra.mxu0 0.0
        %1119 = vmatprep.subr.mxu0 0.0
        %1120 = vmatpush1.msra.mxu0 0.0
        %1121 = vmatprep.subr.mxu0 0.0
        %1122 = vmatpush1.msra.mxu0 %v692
        %1123 = vmatprep.subr.mxu0 0.0
        %1124 = vmatpush2.msra.mxu0 0.0
        %1125 = vmatprep.subr.mxu0 0.0
        %1126 = vmatpush2.msra.mxu0 0.0
        %1127 = vmatprep.subr.mxu0 0.0
        %1128 = vmatpush2.msra.mxu0 0.0
        %1129 = vmatprep.subr.mxu0 0.0
        %1130 = vmatpush2.msra.mxu0 0.0
        %1131 = vmatprep.subr.mxu0 0.0
        %1132 = vmatpush2.msra.mxu0 0.0
        %1133 = vmatprep.subr.mxu0 0.0
        %1134 = vmatpush2.msra.mxu0 0.0
        %1135 = vmatprep.subr.mxu0 0.0
        %1136 = vmatpush2.msra.mxu0 0.0
        %1137 = vmatprep.subr.mxu0 0.0
        %1138 = vmatpush2.msra.mxu0 0.0
        %1139 = vmatprep.subr.mxu0 0.0
        %1140 = vmatpush2.msra.mxu0 0.0
        %1141 = vmatprep.subr.mxu0 0.0
        %1142 = vmatpush2.msra.mxu0 0.0
        %1143 = vmatprep.subr.mxu0 0.0
        %1144 = vmatpush2.msra.mxu0 0.0
        %1145 = vmatprep.subr.mxu0 0.0
        %1146 = vmatpush2.msra.mxu0 0.0
        %1147 = vmatprep.subr.mxu0 0.0
        %1148 = vmatpush2.msra.mxu0 0.0
        %1149 = vmatprep.subr.mxu0 0.0
        %1150 = vmatpush2.msra.mxu0 0.0
        %1151 = vmatprep.subr.mxu0 0.0
        %1152 = vmatpush2.msra.mxu0 0.0
        %1153 = vmatprep.subr.mxu0 0.0
        %1154 = vmatpush2.msra.mxu0 0.0
        %1155 = vmatprep.mubr.f32.mxu0 0.0
        %1156 = vmatmul.mubr.f32.gmra.mxu0 %v1089
        %v1157 = vpop.f32.mrf.mxu0
        %v1158 = vadd.f32 0.0, %v1157
        %v1159 = vpop.f32.mrf.mxu0
        %1160 = vdwg.mxu0
        %v1161 = vadd.f32 %v1084, %v1158
        %v1162 = vadd.f32 %v1161, %v861
        %v1163 = vmax.f32 %v1162, 0.0
        %1164 = vst [vmem:[%s501] sm:$0xf] %v1163
        %s1165 = sand.u32 %s343, 1
        %s1166 = scalar_lea.sflag [#allocation3], %s1165
        %s1167 = sand.u32 %s343, 1
        %s1168 = smul.addr %s1167, 4
        %s1169 = scalar_lea.vmem [#allocation2], %s1168
        // Predicated region
        $region73: #{tpu_custom_call.1} parent=71 // pred_check
          %p1170 = pneg %p353
        $region74: #{tpu_custom_call.1} parent=71 // pred_check_branch
          %1172 = sbr.rel (%p1170) target = $region76
        $region75: #{tpu_custom_call.1} parent=71 // pred_region
          %s1174 = ssub.s32 64, 64
          %1175 = vsyncadd %s1166, %s1174
          %s1176 = smul.addr %s31, 2
          %s1177 = sadd.s32 %s32, %s1176
          %s1178 = smul.addr %s1177, 64
          %s1179 = scalar_lea.hbm %s13, %s1178
          %s1181 = sshll.u32 %s1169, 4
          %s1182 = int_to_ptr.vmem [resolvable:$true] %s1181
          %1184 = dma.vmem_to_hbm [thread:$0]  %s1182, 64, %s1179, %s1166
        $region76: #{tpu_custom_call.1} parent=71 // pred_fallthru
          _
      $region72: #{tpu_custom_call.1} parent=5 // pred_fallthru
        _
      %p1185 = scmp.le.s32.totalorder 2, %s22
      // Predicated region
      $region77: #{tpu_custom_call.1} parent=5 // pred_check
        %p1186 = pneg %p1185
      $region78: #{tpu_custom_call.1} parent=5 // pred_check_branch
        %1188 = sbr.rel (%p1186) target = $region80
      $region79: #{tpu_custom_call.1} parent=5 // pred_region
        %s1189 = ssub.s32 %s22, 2
        // Predicated region
        $region81: #{tpu_custom_call.1} parent=79 // pred_check
          %p1190 = pneg %p359
        $region82: #{tpu_custom_call.1} parent=79 // pred_check_branch
          %1192 = sbr.rel (%p1190) target = $region84
        $region83: #{tpu_custom_call.1} parent=79 // pred_region
          %s1193 = sand.u32 %s344, 1
          %s1194 = scalar_lea.sflag [#allocation3], %s1193
          %s1195 = sand.u32 %s344, 1
          %s1196 = smul.addr %s1195, 4
          %s1197 = scalar_lea.vmem [#allocation2], %s1196
          %1198 = dma.done %s1194, 64
        $region84: #{tpu_custom_call.1} parent=79 // pred_fallthru
          _
      $region80: #{tpu_custom_call.1} parent=5 // pred_fallthru
        _
    $region6: #{tpu_custom_call.1} parent=1 // loop_footer
      %s26 = sadd.s32 1, %s22
    $region7: #{tpu_custom_call.1} parent=1 // loop_footer_branch
      %21 = sbr.rel target = $region3
    $region8: #{tpu_custom_call.1} parent=1 // loop_exit
      _
    %1199 = vsyncpa [#allocation3], 1
    %s1200 = scalar_lea.sflag [#allocation3], 1
    %1201 = vsyncpa %s1200, 1

</llo_original>
